<compile_context>
chip_gen: v7x
topology: tpu7x:2x2x1
jax: 0.10.0
libtpu: 0.0.40
codegen_flags: <defaults>
</compile_context>

<pallas_src>
import functools

import numpy as np

import jax
import jax.numpy as jnp
from jax.experimental import pallas as pl
from jax.experimental.pallas import tpu as pltpu

EPS = 1e-10  # GroupBatchnorm2d eps


def _build_tap_masks(H, W, K, nb):
    """Static per-tap edge masks for a KxK 'same' conv on nb images that are
    concatenated along the lane axis as one (C, nb*H*W) slab.

    Returns (masks, offsets):
      masks   : (K*K, nb*H*W) f32 of 0/1; 1 marks lanes whose tap read stays
                inside its own image (this also kills any cross-image bleed
                introduced by rolling the whole slab).
      offsets : flat lane shift d = dh*W + dw per tap (kh-major order).
    """
    HW = H * W
    L = nb * HW
    pad = (K - 1) // 2
    q = np.arange(L) % HW          # per-image flat position
    h = q // W
    w = q % W
    rows, offsets = [], []
    for kh in range(K):
        for kw in range(K):
            dh, dw = kh - pad, kw - pad
            valid = (h + dh >= 0) & (h + dh < H) & (w + dw >= 0) & (w + dw < W)
            rows.append(valid.astype(np.float32))
            offsets.append(dh * W + dw)
    return jnp.asarray(np.stack(rows, axis=0)), tuple(offsets)


def _group_norm_relu(v, gamma, beta, nb, HW):
    """GroupBatchnorm2d (group_num=1) + ReLU on a (C, nb*HW) slab.

    Stats are per image (per HW-lane sub-range), matching torch: mean/std over
    all C*H*W elements, std unbiased (ddof=1), denominator std + eps.  The
    affine is folded into one per-channel scale/shift (y = relu(v*a + b)).
    """
    C = v.shape[0]
    n = C * HW
    pieces = []
    for i in range(nb):                      # stats only; conv work is batched
        sl = v[:, i * HW:(i + 1) * HW]
        s1 = jnp.sum(sl)                     # single pass: sum + sum-of-squares
        s2 = jnp.sum(sl * sl)
        mean = s1 / n
        var = jnp.maximum(s2 - n * mean * mean, 0.0) / (n - 1)   # ddof=1
        inv = 1.0 / (jnp.sqrt(var) + EPS)    # one scalar reciprocal
        a = inv * gamma                      # (C, 1)
        b = beta - mean * a                  # (C, 1)
        pieces.append(jnp.maximum(sl * a + b, 0.0))
    return pieces[0] if nb == 1 else jnp.concatenate(pieces, axis=1)


def _conv_same_fused(v, w_mat, bias, masks, offsets, L):
    """KxK 'same' conv on the whole (Cin, L=nb*HW) slab as ONE MXU matmul.

    Each tap = one XLU lane roll of the full slab (shared by all images of the
    block) + a precomputed edge-mask multiply.  The K*K shifted taps are
    stacked along sublanes into a (K*K*Cin, L) operand and contracted with the
    (Cout, K*K*Cin) weight matrix in a single jnp.dot.
    """
    taps = []
    for t, d in enumerate(offsets):
        if d == 0:
            taps.append(v)                                   # center tap: no roll/mask
        else:
            shifted = pltpu.roll(v, shift=(-d) % L, axis=1)
            taps.append(shifted * masks[t:t + 1, :])
    stacked = jnp.concatenate(taps, axis=0)                  # (K*K*Cin, L)
    out = jnp.dot(w_mat, stacked, preferred_element_type=jnp.float32)
    return out + bias


def residual_block_kernel(x_ref, mask_ref, g1_ref, be1_ref, w1_ref, b1_ref,
                          g2_ref, be2_ref, w2_ref, b2_ref, o_ref,
                          *, H, W, nb, offsets):
    HW = H * W
    L = nb * HW

    x = x_ref[...].astype(jnp.float32)                       # (C, nb*HW)
    masks = mask_ref[...]                                    # (K*K, nb*HW)

    out = _group_norm_relu(x, g1_ref[...], be1_ref[...], nb, HW)               # bn1+relu
    out = _conv_same_fused(out, w1_ref[...], b1_ref[...], masks, offsets, L)   # conv_1
    out = _group_norm_relu(out, g2_ref[...], be2_ref[...], nb, HW)             # bn2+relu
    out = _conv_same_fused(out, w2_ref[...], b2_ref[...], masks, offsets, L)   # conv_2
    o_ref[...] = (out + x).astype(o_ref.dtype)               # identity shortcut


def _default_images_per_step(N):
    """Size blocks by core count, not VMEM (~4 KiB/image never binds).

    The kernel is per-grid-step-overhead bound (~0.35us/step), so single-TC
    chips (v5e/v6e) take the whole batch in one step; v7x (2 TCs/chip) keeps
    >= 2 'parallel' grid steps so both cores get work.
    """
    if N <= 1:
        return max(N, 1)
    try:
        kind = jax.devices()[0].device_kind.lower()
    except Exception:
        kind = ""
    if ("v7" in kind or "7x" in kind) and N % 2 == 0:
        return N // 2
    return N


def residual_block(x_nchw, gamma1, beta1, w1_oihw, b1,
                   gamma2, beta2, w2_oihw, b2, *, images_per_step=None):
    """ResidualBlock forward (resample=None, output_dim == input_dim).

    Takes PyTorch-layout tensors (NCHW activations, OIHW conv weights) and
    returns the NCHW output.
    """
    N, C, H, W = x_nchw.shape
    Cout, Cin, K, _ = w1_oihw.shape
    assert Cin == C and Cout == C, "identity shortcut needs input_dim == output_dim"
    HW = H * W
    nb = images_per_step if images_per_step is not None else _default_images_per_step(N)
    assert N % nb == 0
    L = nb * HW

    # Lane-concatenated channels-first slab: image i occupies lanes
    # [i*HW, (i+1)*HW) of a (C, N*HW) array.  One tiny wrapper transpose buys
    # per-step (not per-image) rolls/masks/matmuls and a lane-dense output.
    x_cf = x_nchw.reshape(N, C, HW).transpose(1, 0, 2).reshape(C, N * HW)

    # Conv weights as one (Cout, K*K*Cin) matrix in the kernel's tap order
    # (kh-major, then kw, then Cin) -> a single matmul per conv.
    w1_m = jnp.transpose(w1_oihw, (0, 2, 3, 1)).reshape(Cout, K * K * Cin).astype(jnp.float32)
    w2_m = jnp.transpose(w2_oihw, (0, 2, 3, 1)).reshape(Cout, K * K * Cout).astype(jnp.float32)
    g1 = gamma1.reshape(C, 1).astype(jnp.float32)
    be1 = beta1.reshape(C, 1).astype(jnp.float32)
    g2 = gamma2.reshape(C, 1).astype(jnp.float32)
    be2 = beta2.reshape(C, 1).astype(jnp.float32)
    b1c = b1.reshape(Cout, 1).astype(jnp.float32)
    b2c = b2.reshape(Cout, 1).astype(jnp.float32)

    masks, offsets = _build_tap_masks(H, W, K, nb)            # precomputed, const input

    def const_spec(shape):
        return pl.BlockSpec(shape, lambda n: (0,) * len(shape))

    kernel = functools.partial(residual_block_kernel, H=H, W=W, nb=nb, offsets=offsets)

    out_cf = pl.pallas_call(
        kernel,
        out_shape=jax.ShapeDtypeStruct((C, N * HW), x_nchw.dtype),
        grid=(N // nb,),
        in_specs=[
            pl.BlockSpec((C, L), lambda n: (0, n)),   # x slab (lane-dense)
            const_spec((K * K, L)),                   # per-tap edge masks
            const_spec((C, 1)),                       # gamma1
            const_spec((C, 1)),                       # beta1
            const_spec((Cout, K * K * Cin)),          # conv1 weight (fused taps)
            const_spec((Cout, 1)),                    # conv1 bias
            const_spec((C, 1)),                       # gamma2
            const_spec((C, 1)),                       # beta2
            const_spec((Cout, K * K * Cout)),         # conv2 weight (fused taps)
            const_spec((Cout, 1)),                    # conv2 bias
        ],
        out_specs=pl.BlockSpec((C, L), lambda n: (0, n)),     # lane-dense out
        compiler_params=pltpu.CompilerParams(
            dimension_semantics=("parallel",)),
    )(x_cf, masks, g1, be1, w1_m, b1c, g2, be2, w2_m, b2c)

    return out_cf.reshape(C, N, HW).transpose(1, 0, 2).reshape(N, C, H, W)


def _reference_nchw(x, w1_oihw, b1, w2_oihw, b2, gamma1, beta1, gamma2, beta2):
    """Pure-JAX reference mirroring the PyTorch forward (NCHW)."""
    def gn(v, gamma, beta):
        N, C, H, W = v.shape
        vr = v.reshape(N, 1, -1)
        mean = jnp.mean(vr, axis=2, keepdims=True)
        std = jnp.std(vr, axis=2, keepdims=True, ddof=1)
        vr = (vr - mean) / (std + EPS)
        v = vr.reshape(N, C, H, W)
        return v * gamma.reshape(1, C, 1, 1) + beta.reshape(1, C, 1, 1)

    def conv(v, w, b):
        y = jax.lax.conv_general_dilated(
            v, w, (1, 1), "SAME",
            dimension_numbers=("NCHW", "OIHW", "NCHW"),
            precision=jax.lax.Precision.HIGHEST)
        return y + b.reshape(1, -1, 1, 1)

    shortcut = x
    o = gn(x, gamma1, beta1)
    o = jax.nn.relu(o)
    o = conv(o, w1_oihw, b1)
    o = gn(o, gamma2, beta2)
    o = jax.nn.relu(o)
    o = conv(o, w2_oihw, b2)
    return o + shortcut


if __name__ == "__main__":
    # ResidualBlock(input_dim=4, output_dim=4, filter_size=3, resample=None)
    N, C, H, W, K = 2, 4, 16, 16, 3

    key = jax.random.PRNGKey(0)
    k1, k2, k3, k4, k5 = jax.random.split(key, 5)
    x_nchw = jax.random.normal(k1, (N, C, H, W), jnp.float32)          # NCHW input
    w1_oihw = 0.1 * jax.random.normal(k2, (C, C, K, K), jnp.float32)   # conv2d_in_out
    b1 = 0.1 * jax.random.normal(k3, (C,), jnp.float32)
    w2_oihw = 0.1 * jax.random.normal(k4, (C, C, K, K), jnp.float32)   # conv2d_out_out
    b2 = 0.1 * jax.random.normal(k5, (C,), jnp.float32)
    gamma1 = jnp.ones((C,), jnp.float32)    # GroupBatchnorm2d init: ones
    beta1 = jnp.zeros((C,), jnp.float32)    # GroupBatchnorm2d init: zeros
    gamma2 = jnp.ones((C,), jnp.float32)
    beta2 = jnp.zeros((C,), jnp.float32)

    out_nchw = residual_block(x_nchw, gamma1, beta1, w1_oihw, b1,
                              gamma2, beta2, w2_oihw, b2)
    out_nchw = jax.block_until_ready(out_nchw)

    ref = _reference_nchw(x_nchw, w1_oihw, b1, w2_oihw, b2,
                          gamma1, beta1, gamma2, beta2)
    assert out_nchw.shape == ref.shape == (N, C, H, W)
    assert jnp.allclose(out_nchw, ref, atol=1e-3, rtol=1e-3), (
        float(jnp.max(jnp.abs(out_nchw - ref))))
    print("KERNEL_OK")
</pallas_src>

<mosaic_0001>
module attributes {stable_mosaic.version = 11 : i64} {
  func.func @residual_block_kernel(%arg0: i32, %arg1: memref<4x512xf32, #tpu.memory_space<vmem>>, %arg2: memref<9x512xf32, #tpu.memory_space<vmem>>, %arg3: memref<4x1xf32, #tpu.memory_space<vmem>>, %arg4: memref<4x1xf32, #tpu.memory_space<vmem>>, %arg5: memref<4x36xf32, #tpu.memory_space<vmem>>, %arg6: memref<4x1xf32, #tpu.memory_space<vmem>>, %arg7: memref<4x1xf32, #tpu.memory_space<vmem>>, %arg8: memref<4x1xf32, #tpu.memory_space<vmem>>, %arg9: memref<4x36xf32, #tpu.memory_space<vmem>>, %arg10: memref<4x1xf32, #tpu.memory_space<vmem>>, %arg11: memref<4x512xf32, #tpu.memory_space<vmem>>) attributes {dimension_semantics = [#tpu.dimension_semantics<parallel>], iteration_bounds = array<i64: 1>, scalar_prefetch = 0 : i64, scratch_operands = 0 : i64, tpu.core_type = #tpu.core_type<tc>, window_params = [{transform_indices = @transform_0, window_bounds = array<i64: 4, 512>}, {pipeline_mode = #tpu.pipeline_mode<synchronous>, transform_indices = @transform_1, window_bounds = array<i64: 9, 512>}, {pipeline_mode = #tpu.pipeline_mode<synchronous>, transform_indices = @transform_2, window_bounds = array<i64: 4, 1>}, {pipeline_mode = #tpu.pipeline_mode<synchronous>, transform_indices = @transform_3, window_bounds = array<i64: 4, 1>}, {pipeline_mode = #tpu.pipeline_mode<synchronous>, transform_indices = @transform_4, window_bounds = array<i64: 4, 36>}, {pipeline_mode = #tpu.pipeline_mode<synchronous>, transform_indices = @transform_5, window_bounds = array<i64: 4, 1>}, {pipeline_mode = #tpu.pipeline_mode<synchronous>, transform_indices = @transform_6, window_bounds = array<i64: 4, 1>}, {pipeline_mode = #tpu.pipeline_mode<synchronous>, transform_indices = @transform_7, window_bounds = array<i64: 4, 1>}, {pipeline_mode = #tpu.pipeline_mode<synchronous>, transform_indices = @transform_8, window_bounds = array<i64: 4, 36>}, {pipeline_mode = #tpu.pipeline_mode<synchronous>, transform_indices = @transform_9, window_bounds = array<i64: 4, 1>}, {transform_indices = @transform_10, window_bounds = array<i64: 4, 512>}]} {
    %c0 = arith.constant 0 : index
    %c0_0 = arith.constant 0 : index
    %0 = vector.load %arg1[%c0, %c0_0] : memref<4x512xf32, #tpu.memory_space<vmem>>, vector<4x512xf32>
    %c0_1 = arith.constant 0 : index
    %c0_2 = arith.constant 0 : index
    %1 = vector.load %arg2[%c0_1, %c0_2] : memref<9x512xf32, #tpu.memory_space<vmem>>, vector<9x512xf32>
    %c0_3 = arith.constant 0 : index
    %c0_4 = arith.constant 0 : index
    %2 = vector.load %arg3[%c0_3, %c0_4] : memref<4x1xf32, #tpu.memory_space<vmem>>, vector<4x1xf32>
    %c0_5 = arith.constant 0 : index
    %c0_6 = arith.constant 0 : index
    %3 = vector.load %arg4[%c0_5, %c0_6] : memref<4x1xf32, #tpu.memory_space<vmem>>, vector<4x1xf32>
    %4 = vector.extract_strided_slice %0 {offsets = [0, 0], sizes = [4, 256], strides = [1, 1]} : vector<4x512xf32> to vector<4x256xf32>
    %5 = vector.shape_cast %4 : vector<4x256xf32> to vector<1x4x256xf32>
    %cst = arith.constant dense<0.000000e+00> : vector<1xf32>
    %6 = vector.multi_reduction <add>, %5, %cst [1, 2] : vector<1x4x256xf32> to vector<1xf32>
    %7 = vector.shape_cast %6 : vector<1xf32> to vector<1x1x1xf32>
    %8 = vector.extract %7[0, 0, 0] : f32 from vector<1x1x1xf32>
    %9 = arith.mulf %4, %4 : vector<4x256xf32>
    %10 = vector.shape_cast %9 : vector<4x256xf32> to vector<1x4x256xf32>
    %cst_7 = arith.constant dense<0.000000e+00> : vector<1xf32>
    %11 = vector.multi_reduction <add>, %10, %cst_7 [1, 2] : vector<1x4x256xf32> to vector<1xf32>
    %12 = vector.shape_cast %11 : vector<1xf32> to vector<1x1x1xf32>
    %13 = vector.extract %12[0, 0, 0] : f32 from vector<1x1x1xf32>
    %cst_8 = arith.constant 1.024000e+03 : f32
    %14 = arith.divf %8, %cst_8 : f32
    %cst_9 = arith.constant 1.024000e+03 : f32
    %15 = arith.mulf %cst_9, %14 : f32
    %16 = arith.mulf %15, %14 : f32
    %17 = arith.subf %13, %16 : f32
    %cst_10 = arith.constant 0.000000e+00 : f32
    %18 = arith.maximumf %17, %cst_10 : f32
    %cst_11 = arith.constant 1.023000e+03 : f32
    %19 = arith.divf %18, %cst_11 : f32
    %20 = math.sqrt %19 : f32
    %cst_12 = arith.constant 1.000000e-10 : f32
    %21 = arith.addf %20, %cst_12 : f32
    %cst_13 = arith.constant 1.000000e+00 : f32
    %22 = arith.divf %cst_13, %21 : f32
    %23 = vector.broadcast %22 : f32 to vector<4x1xf32>
    %24 = arith.mulf %23, %2 : vector<4x1xf32>
    %25 = vector.broadcast %14 : f32 to vector<4x1xf32>
    %26 = arith.mulf %25, %24 : vector<4x1xf32>
    %27 = arith.subf %3, %26 : vector<4x1xf32>
    %28 = vector.broadcast %24 : vector<4x1xf32> to vector<4x256xf32>
    %29 = arith.mulf %4, %28 : vector<4x256xf32>
    %30 = vector.broadcast %27 : vector<4x1xf32> to vector<4x256xf32>
    %31 = arith.addf %29, %30 : vector<4x256xf32>
    %cst_14 = arith.constant 0.000000e+00 : f32
    %32 = vector.broadcast %cst_14 : f32 to vector<4x256xf32>
    %33 = arith.maximumf %31, %32 : vector<4x256xf32>
    %34 = vector.extract_strided_slice %0 {offsets = [0, 256], sizes = [4, 256], strides = [1, 1]} : vector<4x512xf32> to vector<4x256xf32>
    %35 = vector.shape_cast %34 : vector<4x256xf32> to vector<1x4x256xf32>
    %cst_15 = arith.constant dense<0.000000e+00> : vector<1xf32>
    %36 = vector.multi_reduction <add>, %35, %cst_15 [1, 2] : vector<1x4x256xf32> to vector<1xf32>
    %37 = vector.shape_cast %36 : vector<1xf32> to vector<1x1x1xf32>
    %38 = vector.extract %37[0, 0, 0] : f32 from vector<1x1x1xf32>
    %39 = arith.mulf %34, %34 : vector<4x256xf32>
    %40 = vector.shape_cast %39 : vector<4x256xf32> to vector<1x4x256xf32>
    %cst_16 = arith.constant dense<0.000000e+00> : vector<1xf32>
    %41 = vector.multi_reduction <add>, %40, %cst_16 [1, 2] : vector<1x4x256xf32> to vector<1xf32>
    %42 = vector.shape_cast %41 : vector<1xf32> to vector<1x1x1xf32>
    %43 = vector.extract %42[0, 0, 0] : f32 from vector<1x1x1xf32>
    %cst_17 = arith.constant 1.024000e+03 : f32
    %44 = arith.divf %38, %cst_17 : f32
    %cst_18 = arith.constant 1.024000e+03 : f32
    %45 = arith.mulf %cst_18, %44 : f32
    %46 = arith.mulf %45, %44 : f32
    %47 = arith.subf %43, %46 : f32
    %cst_19 = arith.constant 0.000000e+00 : f32
    %48 = arith.maximumf %47, %cst_19 : f32
    %cst_20 = arith.constant 1.023000e+03 : f32
    %49 = arith.divf %48, %cst_20 : f32
    %50 = math.sqrt %49 : f32
    %cst_21 = arith.constant 1.000000e-10 : f32
    %51 = arith.addf %50, %cst_21 : f32
    %cst_22 = arith.constant 1.000000e+00 : f32
    %52 = arith.divf %cst_22, %51 : f32
    %53 = vector.broadcast %52 : f32 to vector<4x1xf32>
    %54 = arith.mulf %53, %2 : vector<4x1xf32>
    %55 = vector.broadcast %44 : f32 to vector<4x1xf32>
    %56 = arith.mulf %55, %54 : vector<4x1xf32>
    %57 = arith.subf %3, %56 : vector<4x1xf32>
    %58 = vector.broadcast %54 : vector<4x1xf32> to vector<4x256xf32>
    %59 = arith.mulf %34, %58 : vector<4x256xf32>
    %60 = vector.broadcast %57 : vector<4x1xf32> to vector<4x256xf32>
    %61 = arith.addf %59, %60 : vector<4x256xf32>
    %cst_23 = arith.constant 0.000000e+00 : f32
    %62 = vector.broadcast %cst_23 : f32 to vector<4x256xf32>
    %63 = arith.maximumf %61, %62 : vector<4x256xf32>
    %64 = tpu.concatenate %33, %63 in 1 : vector<4x256xf32>, vector<4x256xf32> -> vector<4x512xf32>
    %c0_24 = arith.constant 0 : index
    %c0_25 = arith.constant 0 : index
    %65 = vector.load %arg5[%c0_24, %c0_25] : memref<4x36xf32, #tpu.memory_space<vmem>>, vector<4x36xf32>
    %c0_26 = arith.constant 0 : index
    %c0_27 = arith.constant 0 : index
    %66 = vector.load %arg6[%c0_26, %c0_27] : memref<4x1xf32, #tpu.memory_space<vmem>>, vector<4x1xf32>
    %c17_i32 = arith.constant 17 : i32
    %67 = tpu.dynamic_rotate %64 by %c17_i32 dim 1 : vector<4x512xf32>, i32 -> vector<4x512xf32>
    %68 = vector.extract_strided_slice %1 {offsets = [0, 0], sizes = [1, 512], strides = [1, 1]} : vector<9x512xf32> to vector<1x512xf32>
    %69 = vector.broadcast %68 : vector<1x512xf32> to vector<4x512xf32>
    %70 = arith.mulf %67, %69 : vector<4x512xf32>
    %c16_i32 = arith.constant 16 : i32
    %71 = tpu.dynamic_rotate %64 by %c16_i32 dim 1 : vector<4x512xf32>, i32 -> vector<4x512xf32>
    %72 = vector.extract_strided_slice %1 {offsets = [1, 0], sizes = [1, 512], strides = [1, 1]} : vector<9x512xf32> to vector<1x512xf32>
    %73 = vector.broadcast %72 : vector<1x512xf32> to vector<4x512xf32>
    %74 = arith.mulf %71, %73 : vector<4x512xf32>
    %c15_i32 = arith.constant 15 : i32
    %75 = tpu.dynamic_rotate %64 by %c15_i32 dim 1 : vector<4x512xf32>, i32 -> vector<4x512xf32>
    %76 = vector.extract_strided_slice %1 {offsets = [2, 0], sizes = [1, 512], strides = [1, 1]} : vector<9x512xf32> to vector<1x512xf32>
    %77 = vector.broadcast %76 : vector<1x512xf32> to vector<4x512xf32>
    %78 = arith.mulf %75, %77 : vector<4x512xf32>
    %c1_i32 = arith.constant 1 : i32
    %79 = tpu.dynamic_rotate %64 by %c1_i32 dim 1 : vector<4x512xf32>, i32 -> vector<4x512xf32>
    %80 = vector.extract_strided_slice %1 {offsets = [3, 0], sizes = [1, 512], strides = [1, 1]} : vector<9x512xf32> to vector<1x512xf32>
    %81 = vector.broadcast %80 : vector<1x512xf32> to vector<4x512xf32>
    %82 = arith.mulf %79, %81 : vector<4x512xf32>
    %c511_i32 = arith.constant 511 : i32
    %83 = tpu.dynamic_rotate %64 by %c511_i32 dim 1 : vector<4x512xf32>, i32 -> vector<4x512xf32>
    %84 = vector.extract_strided_slice %1 {offsets = [5, 0], sizes = [1, 512], strides = [1, 1]} : vector<9x512xf32> to vector<1x512xf32>
    %85 = vector.broadcast %84 : vector<1x512xf32> to vector<4x512xf32>
    %86 = arith.mulf %83, %85 : vector<4x512xf32>
    %c497_i32 = arith.constant 497 : i32
    %87 = tpu.dynamic_rotate %64 by %c497_i32 dim 1 : vector<4x512xf32>, i32 -> vector<4x512xf32>
    %88 = vector.extract_strided_slice %1 {offsets = [6, 0], sizes = [1, 512], strides = [1, 1]} : vector<9x512xf32> to vector<1x512xf32>
    %89 = vector.broadcast %88 : vector<1x512xf32> to vector<4x512xf32>
    %90 = arith.mulf %87, %89 : vector<4x512xf32>
    %c496_i32 = arith.constant 496 : i32
    %91 = tpu.dynamic_rotate %64 by %c496_i32 dim 1 : vector<4x512xf32>, i32 -> vector<4x512xf32>
    %92 = vector.extract_strided_slice %1 {offsets = [7, 0], sizes = [1, 512], strides = [1, 1]} : vector<9x512xf32> to vector<1x512xf32>
    %93 = vector.broadcast %92 : vector<1x512xf32> to vector<4x512xf32>
    %94 = arith.mulf %91, %93 : vector<4x512xf32>
    %c495_i32 = arith.constant 495 : i32
    %95 = tpu.dynamic_rotate %64 by %c495_i32 dim 1 : vector<4x512xf32>, i32 -> vector<4x512xf32>
    %96 = vector.extract_strided_slice %1 {offsets = [8, 0], sizes = [1, 512], strides = [1, 1]} : vector<9x512xf32> to vector<1x512xf32>
    %97 = vector.broadcast %96 : vector<1x512xf32> to vector<4x512xf32>
    %98 = arith.mulf %95, %97 : vector<4x512xf32>
    %99 = tpu.concatenate %70, %74, %78, %82, %64, %86, %90, %94, %98 in 0 : vector<4x512xf32>, vector<4x512xf32>, vector<4x512xf32>, vector<4x512xf32>, vector<4x512xf32>, vector<4x512xf32>, vector<4x512xf32>, vector<4x512xf32>, vector<4x512xf32> -> vector<36x512xf32>
    %cst_28 = arith.constant dense<0.000000e+00> : vector<4x512xf32>
    %100 = tpu.matmul %65, %99, %cst_28 {dimension_numbers = #tpu.dot_dimension_numbers<[1], [0], [0], [1], [0, 0, 1, 1], [], []>} : vector<4x36xf32>, vector<36x512xf32>, vector<4x512xf32> -> vector<4x512xf32>
    %101 = vector.broadcast %66 : vector<4x1xf32> to vector<4x512xf32>
    %102 = arith.addf %100, %101 : vector<4x512xf32>
    %c0_29 = arith.constant 0 : index
    %c0_30 = arith.constant 0 : index
    %103 = vector.load %arg7[%c0_29, %c0_30] : memref<4x1xf32, #tpu.memory_space<vmem>>, vector<4x1xf32>
    %c0_31 = arith.constant 0 : index
    %c0_32 = arith.constant 0 : index
    %104 = vector.load %arg8[%c0_31, %c0_32] : memref<4x1xf32, #tpu.memory_space<vmem>>, vector<4x1xf32>
    %105 = vector.extract_strided_slice %102 {offsets = [0, 0], sizes = [4, 256], strides = [1, 1]} : vector<4x512xf32> to vector<4x256xf32>
    %106 = vector.shape_cast %105 : vector<4x256xf32> to vector<1x4x256xf32>
    %cst_33 = arith.constant dense<0.000000e+00> : vector<1xf32>
    %107 = vector.multi_reduction <add>, %106, %cst_33 [1, 2] : vector<1x4x256xf32> to vector<1xf32>
    %108 = vector.shape_cast %107 : vector<1xf32> to vector<1x1x1xf32>
    %109 = vector.extract %108[0, 0, 0] : f32 from vector<1x1x1xf32>
    %110 = arith.mulf %105, %105 : vector<4x256xf32>
    %111 = vector.shape_cast %110 : vector<4x256xf32> to vector<1x4x256xf32>
    %cst_34 = arith.constant dense<0.000000e+00> : vector<1xf32>
    %112 = vector.multi_reduction <add>, %111, %cst_34 [1, 2] : vector<1x4x256xf32> to vector<1xf32>
    %113 = vector.shape_cast %112 : vector<1xf32> to vector<1x1x1xf32>
    %114 = vector.extract %113[0, 0, 0] : f32 from vector<1x1x1xf32>
    %cst_35 = arith.constant 1.024000e+03 : f32
    %115 = arith.divf %109, %cst_35 : f32
    %cst_36 = arith.constant 1.024000e+03 : f32
    %116 = arith.mulf %cst_36, %115 : f32
    %117 = arith.mulf %116, %115 : f32
    %118 = arith.subf %114, %117 : f32
    %cst_37 = arith.constant 0.000000e+00 : f32
    %119 = arith.maximumf %118, %cst_37 : f32
    %cst_38 = arith.constant 1.023000e+03 : f32
    %120 = arith.divf %119, %cst_38 : f32
    %121 = math.sqrt %120 : f32
    %cst_39 = arith.constant 1.000000e-10 : f32
    %122 = arith.addf %121, %cst_39 : f32
    %cst_40 = arith.constant 1.000000e+00 : f32
    %123 = arith.divf %cst_40, %122 : f32
    %124 = vector.broadcast %123 : f32 to vector<4x1xf32>
    %125 = arith.mulf %124, %103 : vector<4x1xf32>
    %126 = vector.broadcast %115 : f32 to vector<4x1xf32>
    %127 = arith.mulf %126, %125 : vector<4x1xf32>
    %128 = arith.subf %104, %127 : vector<4x1xf32>
    %129 = vector.broadcast %125 : vector<4x1xf32> to vector<4x256xf32>
    %130 = arith.mulf %105, %129 : vector<4x256xf32>
    %131 = vector.broadcast %128 : vector<4x1xf32> to vector<4x256xf32>
    %132 = arith.addf %130, %131 : vector<4x256xf32>
    %cst_41 = arith.constant 0.000000e+00 : f32
    %133 = vector.broadcast %cst_41 : f32 to vector<4x256xf32>
    %134 = arith.maximumf %132, %133 : vector<4x256xf32>
    %135 = vector.extract_strided_slice %102 {offsets = [0, 256], sizes = [4, 256], strides = [1, 1]} : vector<4x512xf32> to vector<4x256xf32>
    %136 = vector.shape_cast %135 : vector<4x256xf32> to vector<1x4x256xf32>
    %cst_42 = arith.constant dense<0.000000e+00> : vector<1xf32>
    %137 = vector.multi_reduction <add>, %136, %cst_42 [1, 2] : vector<1x4x256xf32> to vector<1xf32>
    %138 = vector.shape_cast %137 : vector<1xf32> to vector<1x1x1xf32>
    %139 = vector.extract %138[0, 0, 0] : f32 from vector<1x1x1xf32>
    %140 = arith.mulf %135, %135 : vector<4x256xf32>
    %141 = vector.shape_cast %140 : vector<4x256xf32> to vector<1x4x256xf32>
    %cst_43 = arith.constant dense<0.000000e+00> : vector<1xf32>
    %142 = vector.multi_reduction <add>, %141, %cst_43 [1, 2] : vector<1x4x256xf32> to vector<1xf32>
    %143 = vector.shape_cast %142 : vector<1xf32> to vector<1x1x1xf32>
    %144 = vector.extract %143[0, 0, 0] : f32 from vector<1x1x1xf32>
    %cst_44 = arith.constant 1.024000e+03 : f32
    %145 = arith.divf %139, %cst_44 : f32
    %cst_45 = arith.constant 1.024000e+03 : f32
    %146 = arith.mulf %cst_45, %145 : f32
    %147 = arith.mulf %146, %145 : f32
    %148 = arith.subf %144, %147 : f32
    %cst_46 = arith.constant 0.000000e+00 : f32
    %149 = arith.maximumf %148, %cst_46 : f32
    %cst_47 = arith.constant 1.023000e+03 : f32
    %150 = arith.divf %149, %cst_47 : f32
    %151 = math.sqrt %150 : f32
    %cst_48 = arith.constant 1.000000e-10 : f32
    %152 = arith.addf %151, %cst_48 : f32
    %cst_49 = arith.constant 1.000000e+00 : f32
    %153 = arith.divf %cst_49, %152 : f32
    %154 = vector.broadcast %153 : f32 to vector<4x1xf32>
    %155 = arith.mulf %154, %103 : vector<4x1xf32>
    %156 = vector.broadcast %145 : f32 to vector<4x1xf32>
    %157 = arith.mulf %156, %155 : vector<4x1xf32>
    %158 = arith.subf %104, %157 : vector<4x1xf32>
    %159 = vector.broadcast %155 : vector<4x1xf32> to vector<4x256xf32>
    %160 = arith.mulf %135, %159 : vector<4x256xf32>
    %161 = vector.broadcast %158 : vector<4x1xf32> to vector<4x256xf32>
    %162 = arith.addf %160, %161 : vector<4x256xf32>
    %cst_50 = arith.constant 0.000000e+00 : f32
    %163 = vector.broadcast %cst_50 : f32 to vector<4x256xf32>
    %164 = arith.maximumf %162, %163 : vector<4x256xf32>
    %165 = tpu.concatenate %134, %164 in 1 : vector<4x256xf32>, vector<4x256xf32> -> vector<4x512xf32>
    %c0_51 = arith.constant 0 : index
    %c0_52 = arith.constant 0 : index
    %166 = vector.load %arg9[%c0_51, %c0_52] : memref<4x36xf32, #tpu.memory_space<vmem>>, vector<4x36xf32>
    %c0_53 = arith.constant 0 : index
    %c0_54 = arith.constant 0 : index
    %167 = vector.load %arg10[%c0_53, %c0_54] : memref<4x1xf32, #tpu.memory_space<vmem>>, vector<4x1xf32>
    %c17_i32_55 = arith.constant 17 : i32
    %168 = tpu.dynamic_rotate %165 by %c17_i32_55 dim 1 : vector<4x512xf32>, i32 -> vector<4x512xf32>
    %169 = vector.extract_strided_slice %1 {offsets = [0, 0], sizes = [1, 512], strides = [1, 1]} : vector<9x512xf32> to vector<1x512xf32>
    %170 = vector.broadcast %169 : vector<1x512xf32> to vector<4x512xf32>
    %171 = arith.mulf %168, %170 : vector<4x512xf32>
    %c16_i32_56 = arith.constant 16 : i32
    %172 = tpu.dynamic_rotate %165 by %c16_i32_56 dim 1 : vector<4x512xf32>, i32 -> vector<4x512xf32>
    %173 = vector.extract_strided_slice %1 {offsets = [1, 0], sizes = [1, 512], strides = [1, 1]} : vector<9x512xf32> to vector<1x512xf32>
    %174 = vector.broadcast %173 : vector<1x512xf32> to vector<4x512xf32>
    %175 = arith.mulf %172, %174 : vector<4x512xf32>
    %c15_i32_57 = arith.constant 15 : i32
    %176 = tpu.dynamic_rotate %165 by %c15_i32_57 dim 1 : vector<4x512xf32>, i32 -> vector<4x512xf32>
    %177 = vector.extract_strided_slice %1 {offsets = [2, 0], sizes = [1, 512], strides = [1, 1]} : vector<9x512xf32> to vector<1x512xf32>
    %178 = vector.broadcast %177 : vector<1x512xf32> to vector<4x512xf32>
    %179 = arith.mulf %176, %178 : vector<4x512xf32>
    %c1_i32_58 = arith.constant 1 : i32
    %180 = tpu.dynamic_rotate %165 by %c1_i32_58 dim 1 : vector<4x512xf32>, i32 -> vector<4x512xf32>
    %181 = vector.extract_strided_slice %1 {offsets = [3, 0], sizes = [1, 512], strides = [1, 1]} : vector<9x512xf32> to vector<1x512xf32>
    %182 = vector.broadcast %181 : vector<1x512xf32> to vector<4x512xf32>
    %183 = arith.mulf %180, %182 : vector<4x512xf32>
    %c511_i32_59 = arith.constant 511 : i32
    %184 = tpu.dynamic_rotate %165 by %c511_i32_59 dim 1 : vector<4x512xf32>, i32 -> vector<4x512xf32>
    %185 = vector.extract_strided_slice %1 {offsets = [5, 0], sizes = [1, 512], strides = [1, 1]} : vector<9x512xf32> to vector<1x512xf32>
    %186 = vector.broadcast %185 : vector<1x512xf32> to vector<4x512xf32>
    %187 = arith.mulf %184, %186 : vector<4x512xf32>
    %c497_i32_60 = arith.constant 497 : i32
    %188 = tpu.dynamic_rotate %165 by %c497_i32_60 dim 1 : vector<4x512xf32>, i32 -> vector<4x512xf32>
    %189 = vector.extract_strided_slice %1 {offsets = [6, 0], sizes = [1, 512], strides = [1, 1]} : vector<9x512xf32> to vector<1x512xf32>
    %190 = vector.broadcast %189 : vector<1x512xf32> to vector<4x512xf32>
    %191 = arith.mulf %188, %190 : vector<4x512xf32>
    %c496_i32_61 = arith.constant 496 : i32
    %192 = tpu.dynamic_rotate %165 by %c496_i32_61 dim 1 : vector<4x512xf32>, i32 -> vector<4x512xf32>
    %193 = vector.extract_strided_slice %1 {offsets = [7, 0], sizes = [1, 512], strides = [1, 1]} : vector<9x512xf32> to vector<1x512xf32>
    %194 = vector.broadcast %193 : vector<1x512xf32> to vector<4x512xf32>
    %195 = arith.mulf %192, %194 : vector<4x512xf32>
    %c495_i32_62 = arith.constant 495 : i32
    %196 = tpu.dynamic_rotate %165 by %c495_i32_62 dim 1 : vector<4x512xf32>, i32 -> vector<4x512xf32>
    %197 = vector.extract_strided_slice %1 {offsets = [8, 0], sizes = [1, 512], strides = [1, 1]} : vector<9x512xf32> to vector<1x512xf32>
    %198 = vector.broadcast %197 : vector<1x512xf32> to vector<4x512xf32>
    %199 = arith.mulf %196, %198 : vector<4x512xf32>
    %200 = tpu.concatenate %171, %175, %179, %183, %165, %187, %191, %195, %199 in 0 : vector<4x512xf32>, vector<4x512xf32>, vector<4x512xf32>, vector<4x512xf32>, vector<4x512xf32>, vector<4x512xf32>, vector<4x512xf32>, vector<4x512xf32>, vector<4x512xf32> -> vector<36x512xf32>
    %cst_63 = arith.constant dense<0.000000e+00> : vector<4x512xf32>
    %201 = tpu.matmul %166, %200, %cst_63 {dimension_numbers = #tpu.dot_dimension_numbers<[1], [0], [0], [1], [0, 0, 1, 1], [], []>} : vector<4x36xf32>, vector<36x512xf32>, vector<4x512xf32> -> vector<4x512xf32>
    %202 = vector.broadcast %167 : vector<4x1xf32> to vector<4x512xf32>
    %203 = arith.addf %201, %202 : vector<4x512xf32>
    %204 = arith.addf %203, %0 : vector<4x512xf32>
    %c0_64 = arith.constant 0 : index
    %c0_65 = arith.constant 0 : index
    %205 = vector.load %arg11[%c0_64, %c0_65] : memref<4x512xf32, #tpu.memory_space<vmem>>, vector<4x512xf32>
    tpu.vector_store %arg11[%c0_64, %c0_65], %204 {strides = array<i32>} : memref<4x512xf32, #tpu.memory_space<vmem>>, vector<4x512xf32>,
    return
  }
  func.func @transform_0(%arg0: i32) -> (i32, i32) {
    %c0_i32 = arith.constant 0 : i32
    %c0_i32_0 = arith.constant 0 : i32
    return %c0_i32, %arg0 : i32, i32
  }
  func.func @transform_1(%arg0: i32) -> (i32, i32) {
    %c0_i32 = arith.constant 0 : i32
    %c0_i32_0 = arith.constant 0 : i32
    %c0_i32_1 = arith.constant 0 : i32
    return %c0_i32, %c0_i32_0 : i32, i32
  }
  func.func @transform_2(%arg0: i32) -> (i32, i32) {
    %c0_i32 = arith.constant 0 : i32
    %c0_i32_0 = arith.constant 0 : i32
    %c0_i32_1 = arith.constant 0 : i32
    return %c0_i32, %c0_i32_0 : i32, i32
  }
  func.func @transform_3(%arg0: i32) -> (i32, i32) {
    %c0_i32 = arith.constant 0 : i32
    %c0_i32_0 = arith.constant 0 : i32
    %c0_i32_1 = arith.constant 0 : i32
    return %c0_i32, %c0_i32_0 : i32, i32
  }
  func.func @transform_4(%arg0: i32) -> (i32, i32) {
    %c0_i32 = arith.constant 0 : i32
    %c0_i32_0 = arith.constant 0 : i32
    %c0_i32_1 = arith.constant 0 : i32
    return %c0_i32, %c0_i32_0 : i32, i32
  }
  func.func @transform_5(%arg0: i32) -> (i32, i32) {
    %c0_i32 = arith.constant 0 : i32
    %c0_i32_0 = arith.constant 0 : i32
    %c0_i32_1 = arith.constant 0 : i32
    return %c0_i32, %c0_i32_0 : i32, i32
  }
  func.func @transform_6(%arg0: i32) -> (i32, i32) {
    %c0_i32 = arith.constant 0 : i32
    %c0_i32_0 = arith.constant 0 : i32
    %c0_i32_1 = arith.constant 0 : i32
    return %c0_i32, %c0_i32_0 : i32, i32
  }
  func.func @transform_7(%arg0: i32) -> (i32, i32) {
    %c0_i32 = arith.constant 0 : i32
    %c0_i32_0 = arith.constant 0 : i32
    %c0_i32_1 = arith.constant 0 : i32
    return %c0_i32, %c0_i32_0 : i32, i32
  }
  func.func @transform_8(%arg0: i32) -> (i32, i32) {
    %c0_i32 = arith.constant 0 : i32
    %c0_i32_0 = arith.constant 0 : i32
    %c0_i32_1 = arith.constant 0 : i32
    return %c0_i32, %c0_i32_0 : i32, i32
  }
  func.func @transform_9(%arg0: i32) -> (i32, i32) {
    %c0_i32 = arith.constant 0 : i32
    %c0_i32_0 = arith.constant 0 : i32
    %c0_i32_1 = arith.constant 0 : i32
    return %c0_i32, %c0_i32_0 : i32, i32
  }
  func.func @transform_10(%arg0: i32) -> (i32, i32) {
    %c0_i32 = arith.constant 0 : i32
    %c0_i32_0 = arith.constant 0 : i32
    return %c0_i32, %arg0 : i32, i32
  }
}

</mosaic_0001>

<llo_original>
// kernel: tpu_custom_call.1
$region0: #{tpu_custom_call.1}
  #allocation0 [shape = 'u32[]', space=smem, size = 0x4, offset = 0x4, fixed_abs, tag = 'smem constant byte address 0x4 - core index']
  #allocation1 [shape = 'u32[144,128]{1,0:T(1,128)}', space=vmem, size = 0x12000, scoped, tag = 'internal scratch']
  %s0 = inlined_call_operand.vmem [shape: f32[4,512], index: 0, kind: input, shape index: {}]
  %s1 = inlined_call_operand.hbm [shape: f32[9,512], index: 1, kind: input, shape index: {}]
  %s2 = inlined_call_operand.vmem [shape: f32[4,1], index: 2, kind: input, shape index: {}]
  %s3 = inlined_call_operand.vmem [shape: f32[4,1], index: 3, kind: input, shape index: {}]
  %s4 = inlined_call_operand.vmem [shape: f32[4,36], index: 4, kind: input, shape index: {}]
  %s5 = inlined_call_operand.vmem [shape: f32[4,1], index: 5, kind: input, shape index: {}]
  %s6 = inlined_call_operand.vmem [shape: f32[4,1], index: 6, kind: input, shape index: {}]
  %s7 = inlined_call_operand.vmem [shape: f32[4,1], index: 7, kind: input, shape index: {}]
  %s8 = inlined_call_operand.vmem [shape: f32[4,36], index: 8, kind: input, shape index: {}]
  %s9 = inlined_call_operand.vmem [shape: f32[4,1], index: 9, kind: input, shape index: {}]
  %s10 = inlined_call_operand.hbm [shape: f32[4,512], index: 10, kind: output, shape index: {}]
  %s11 = sld [smem:[#allocation0]]
  $region54: #{tpu_custom_call.1} parent=0
    _
  %s13 = ssub.s32 1, %s11
  %s14 = scalar_select 0, %s13, %s11
  $region1: #{tpu_custom_call.1} parent=0
    #allocation2 [shape = 'u8[32768]{0}', space=vmem, size = 0x8000, scoped, tag = 'input window, operand 1, single buffered']
    #allocation3 [shape = 's32[1]{0}', space=sflag, size = 0x4, scoped, tag = 'scoped memory for tpu_custom_call.1']
    #allocation4 [shape = 's32[1]{0}', space=sflag, size = 0x4, scoped, tag = 'scoped memory for tpu_custom_call.1']
    #allocation5 [shape = 'u8[8192]{0}', space=vmem, size = 0x2000, scoped, tag = 'output window, operand 0, single buffered']
    %15 = vsyncpa [#allocation3], 0
    %16 = vsyncpa [#allocation4], 0
    // Predicated region
    $region2: #{tpu_custom_call.1} parent=1 // pred_check
      _
    $region3: #{tpu_custom_call.1} parent=1 // pred_check_branch
      %18 = sbr.rel (0) target = $region5
    $region4: #{tpu_custom_call.1} parent=1 // pred_region
      _
    $region5: #{tpu_custom_call.1} parent=1 // pred_fallthru
      _
    // Predicated region
    $region6: #{tpu_custom_call.1} parent=1 // pred_check
      _
    $region7: #{tpu_custom_call.1} parent=1 // pred_check_branch
      %20 = sbr.rel (0) target = $region9
    $region8: #{tpu_custom_call.1} parent=1 // pred_region
      %s22 = ssub.s32 1024, 1024
      %23 = vsyncadd [#allocation3], %s22
      %s24 = sshll.u32 [#allocation2], 4
      %s25 = int_to_ptr.vmem [resolvable:$true] %s24
      %30 = dma.hbm_to_vmem [thread:$0]  %s1, 1024, %s25, [#allocation3], 512, 512, 32
    $region9: #{tpu_custom_call.1} parent=1 // pred_fallthru
      _
    // Predicated region
    $region10: #{tpu_custom_call.1} parent=1 // pred_check
      _
    $region11: #{tpu_custom_call.1} parent=1 // pred_check_branch
      %32 = sbr.rel (0) target = $region13
    $region12: #{tpu_custom_call.1} parent=1 // pred_region
      _
    $region13: #{tpu_custom_call.1} parent=1 // pred_fallthru
      _
    // Predicated region
    $region14: #{tpu_custom_call.1} parent=1 // pred_check
      _
    $region15: #{tpu_custom_call.1} parent=1 // pred_check_branch
      %34 = sbr.rel (0) target = $region17
    $region16: #{tpu_custom_call.1} parent=1 // pred_region
      _
    $region17: #{tpu_custom_call.1} parent=1 // pred_fallthru
      _
    // Predicated region
    $region18: #{tpu_custom_call.1} parent=1 // pred_check
      _
    $region19: #{tpu_custom_call.1} parent=1 // pred_check_branch
      %36 = sbr.rel (0) target = $region21
    $region20: #{tpu_custom_call.1} parent=1 // pred_region
      _
    $region21: #{tpu_custom_call.1} parent=1 // pred_fallthru
      _
    // Predicated region
    $region22: #{tpu_custom_call.1} parent=1 // pred_check
      _
    $region23: #{tpu_custom_call.1} parent=1 // pred_check_branch
      %38 = sbr.rel (0) target = $region25
    $region24: #{tpu_custom_call.1} parent=1 // pred_region
      _
    $region25: #{tpu_custom_call.1} parent=1 // pred_fallthru
      _
    // Predicated region
    $region26: #{tpu_custom_call.1} parent=1 // pred_check
      _
    $region27: #{tpu_custom_call.1} parent=1 // pred_check_branch
      %40 = sbr.rel (0) target = $region29
    $region28: #{tpu_custom_call.1} parent=1 // pred_region
      _
    $region29: #{tpu_custom_call.1} parent=1 // pred_fallthru
      _
    // Predicated region
    $region30: #{tpu_custom_call.1} parent=1 // pred_check
      _
    $region31: #{tpu_custom_call.1} parent=1 // pred_check_branch
      %42 = sbr.rel (0) target = $region33
    $region32: #{tpu_custom_call.1} parent=1 // pred_region
      _
    $region33: #{tpu_custom_call.1} parent=1 // pred_fallthru
      _
    // Predicated region
    $region34: #{tpu_custom_call.1} parent=1 // pred_check
      _
    $region35: #{tpu_custom_call.1} parent=1 // pred_check_branch
      %44 = sbr.rel (0) target = $region37
    $region36: #{tpu_custom_call.1} parent=1 // pred_region
      _
    $region37: #{tpu_custom_call.1} parent=1 // pred_fallthru
      _
    // Predicated region
    $region38: #{tpu_custom_call.1} parent=1 // pred_check
      _
    $region39: #{tpu_custom_call.1} parent=1 // pred_check_branch
      %46 = sbr.rel (0) target = $region41
    $region40: #{tpu_custom_call.1} parent=1 // pred_region
      _
    $region41: #{tpu_custom_call.1} parent=1 // pred_fallthru
      _
    // Predicated region
    $region42: #{tpu_custom_call.1} parent=1 // pred_check
      _
    $region43: #{tpu_custom_call.1} parent=1 // pred_check_branch
      %48 = sbr.rel (0) target = $region45
    $region44: #{tpu_custom_call.1} parent=1 // pred_region
      %49 = dma.done [#allocation3], 1024
    $region45: #{tpu_custom_call.1} parent=1 // pred_fallthru
      _
    %v50 = vld [vmem:[%s0] sm:$0xff]
    %v51 = vld [vmem:[%s0 + $0x8] sm:$0xff]
    %v52 = vld [vmem:[#allocation2] sm:$0xff]
    %v53 = vld [vmem:[#allocation2 + $0x8] sm:$0xff]
    %v54 = vld [vmem:[#allocation2 + $0x10] sm:$0xff]
    %v55 = vld [vmem:[#allocation2 + $0x18] sm:$0xff]
    %v56 = vld [vmem:[#allocation2 + $0x20] sm:$0x1]
    %v57 = vld [vmem:[#allocation2 + $0x28] sm:$0x1]
    %v58 = vld [vmem:[#allocation2 + $0x30] sm:$0x1]
    %v59 = vld [vmem:[#allocation2 + $0x38] sm:$0x1]
    %v60 = vld [vmem:[%s2] sm:$0xf]
    %v61 = vld [vmem:[%s3] sm:$0xf]
    %v63 = vcombine.high %v50, %v50
    %vm65 = vcmask 1043456
    %v66 = vsel %vm65, %v50, 0.0
    %v67 = vsel %vm65, %v63, 0.0
    %v68 = vadd.f32 %v66, %v67
    %69 = vadd.xlane.f32.xlu0 %v68
    %v70 = vpop.xlane.xlu0 %69
    %v71 = vrot.slane %v70, 4
    %v72 = vadd.f32 %v70, %v71
    %v73 = vrot.slane %v72, 2
    %v74 = vadd.f32 %v72, %v73
    %v75 = vrot.slane %v74, 1
    %v76 = vadd.f32 %v74, %v75
    %s77 = vtos %v76
    %v78 = vmul.f32 %v50, %v50
    %v80 = vcombine.high %v78, %v78
    %v82 = vsel %vm65, %v78, 0.0
    %v83 = vsel %vm65, %v80, 0.0
    %v84 = vadd.f32 %v82, %v83
    %85 = vadd.xlane.f32.xlu0 %v84
    %v86 = vpop.xlane.xlu0 %85
    %v87 = vrot.slane %v86, 4
    %v88 = vadd.f32 %v86, %v87
    %v89 = vrot.slane %v88, 2
    %v90 = vadd.f32 %v88, %v89
    %v91 = vrot.slane %v90, 1
    %v92 = vadd.f32 %v90, %v91
    %s93 = vtos %v92
    %v94 = vrcp.pop 1024.0
    %s95 = vtos %v94
    %s96 = smul.f32 %s77, %s95
    %s97 = smul.f32 %s96, 1024.0
    %s98 = smul.f32 %s97, %s96
    %s99 = ssub.f32 %s93, %s98
    %s100 = smax.f32 %s99, 0.0
    %v101 = vrcp.pop 1023.0
    %s102 = vtos %v101
    %s103 = smul.f32 %s100, %s102
    %v104 = vstv %s103
    %v105 = vrsqrt.pop %v104
    %v106 = vmul.f32 %v104, %v105
    %vm107 = vcmp.eq.f32.partialorder %v104, inf
    %v108 = vsel %vm107, %v104, %v106
    %vm109 = vcmp.eq.f32.partialorder %v104, 0.0
    %v110 = vand.u32 %v104, 2147483648
    %v111 = vsel %vm109, %v110, %v108
    %s112 = vtos %v111
    %s113 = sadd.f32 %s112, 1e-10
    %v114 = vstv %s113
    %v115 = vrcp.pop %v114
    %s116 = vtos %v115
    %v117 = vstv %s116
    %v118 = vmul.f32 %v117, %v60
    %v119 = vstv %s96
    %v120 = vmul.f32 %v119, %v118
    %v121 = vsub.f32 %v61, %v120
    %123 = vset.pattern.permute.xlu0 0
    %124 = vperm.xlu0 %123, %v118
    %v125 = vpop.permute.xlu0 %124
    %v127 = vunpack.c.l.s4 839922192
    %v128 = vunpack.c.0.s8 %v127
    %v129 = vlaneseq
    %v130 = vshrl.u32 %v129, 7
    %v131 = vsub.s32 %v128, %v130
    %v132 = vrot.slane %v125, %v131
    %v134 = vmul.f32 %v50, %v132
    %136 = vset.pattern.permute.xlu0 0
    %137 = vperm.xlu0 %136, %v121
    %v138 = vpop.permute.xlu0 %137
    %v140 = vunpack.c.l.s4 839922192
    %v141 = vunpack.c.0.s8 %v140
    %v142 = vlaneseq
    %v143 = vshrl.u32 %v142, 7
    %v144 = vsub.s32 %v141, %v143
    %v145 = vrot.slane %v138, %v144
    %v147 = vadd.f32 %v134, %v145
    %v148 = vmax.f32 %v147, 0.0
    %v150 = vcombine.high %v51, %v51
    %v152 = vsel %vm65, %v51, 0.0
    %v153 = vsel %vm65, %v150, 0.0
    %v154 = vadd.f32 %v152, %v153
    %155 = vadd.xlane.f32.xlu0 %v154
    %v156 = vpop.xlane.xlu0 %155
    %v157 = vrot.slane %v156, 4
    %v158 = vadd.f32 %v156, %v157
    %v159 = vrot.slane %v158, 2
    %v160 = vadd.f32 %v158, %v159
    %v161 = vrot.slane %v160, 1
    %v162 = vadd.f32 %v160, %v161
    %s163 = vtos %v162
    %v164 = vmul.f32 %v51, %v51
    %v166 = vcombine.high %v164, %v164
    %v168 = vsel %vm65, %v164, 0.0
    %v169 = vsel %vm65, %v166, 0.0
    %v170 = vadd.f32 %v168, %v169
    %171 = vadd.xlane.f32.xlu0 %v170
    %v172 = vpop.xlane.xlu0 %171
    %v173 = vrot.slane %v172, 4
    %v174 = vadd.f32 %v172, %v173
    %v175 = vrot.slane %v174, 2
    %v176 = vadd.f32 %v174, %v175
    %v177 = vrot.slane %v176, 1
    %v178 = vadd.f32 %v176, %v177
    %s179 = vtos %v178
    %v180 = vrcp.pop 1024.0
    %s181 = vtos %v180
    %s182 = smul.f32 %s163, %s181
    %s183 = smul.f32 %s182, 1024.0
    %s184 = smul.f32 %s183, %s182
    %s185 = ssub.f32 %s179, %s184
    %s186 = smax.f32 %s185, 0.0
    %v187 = vrcp.pop 1023.0
    %s188 = vtos %v187
    %s189 = smul.f32 %s186, %s188
    %v190 = vstv %s189
    %v191 = vrsqrt.pop %v190
    %v192 = vmul.f32 %v190, %v191
    %vm193 = vcmp.eq.f32.partialorder %v190, inf
    %v194 = vsel %vm193, %v190, %v192
    %vm195 = vcmp.eq.f32.partialorder %v190, 0.0
    %v196 = vand.u32 %v190, 2147483648
    %v197 = vsel %vm195, %v196, %v194
    %s198 = vtos %v197
    %s199 = sadd.f32 %s198, 1e-10
    %v200 = vstv %s199
    %v201 = vrcp.pop %v200
    %s202 = vtos %v201
    %v203 = vstv %s202
    %v204 = vmul.f32 %v203, %v60
    %v205 = vstv %s182
    %v206 = vmul.f32 %v205, %v204
    %v207 = vsub.f32 %v61, %v206
    %209 = vset.pattern.permute.xlu0 0
    %210 = vperm.xlu0 %209, %v204
    %v211 = vpop.permute.xlu0 %210
    %v213 = vunpack.c.l.s4 839922192
    %v214 = vunpack.c.0.s8 %v213
    %v215 = vlaneseq
    %v216 = vshrl.u32 %v215, 7
    %v217 = vsub.s32 %v214, %v216
    %v218 = vrot.slane %v211, %v217
    %v220 = vmul.f32 %v51, %v218
    %222 = vset.pattern.permute.xlu0 0
    %223 = vperm.xlu0 %222, %v207
    %v224 = vpop.permute.xlu0 %223
    %v226 = vunpack.c.l.s4 839922192
    %v227 = vunpack.c.0.s8 %v226
    %v228 = vlaneseq
    %v229 = vshrl.u32 %v228, 7
    %v230 = vsub.s32 %v227, %v229
    %v231 = vrot.slane %v224, %v230
    %v233 = vadd.f32 %v220, %v231
    %v234 = vmax.f32 %v233, 0.0
    %v236 = vcombine.high %v148, %v148
    %v239 = vcombine.high %v234, %v234
    %v241 = vld [vmem:[%s4] sm:$0xf]
    %v242 = vld [vmem:[%s5] sm:$0xf]
    %243 = vrot.lane.b32.xlu0 %v148, 17
    %v244 = vpop.permute.xlu0 %243
    %245 = vrot.lane.b32.xlu0 %v236, 17
    %v246 = vpop.permute.xlu0 %245
    %247 = vrot.lane.b32.xlu0 %v234, 17
    %v248 = vpop.permute.xlu0 %247
    %249 = vrot.lane.b32.xlu0 %v239, 17
    %v250 = vpop.permute.xlu0 %249
    %v251 = vlaneseq
    %v252 = vand.u32 %v251, 127
    %vm253 = vcmp.lt.s32.totalorder %v252, 17
    %v254 = vsel %vm253, %v248, %v250
    %v255 = vsel %vm253, %v246, %v248
    %v256 = vsel %vm253, %v244, %v246
    %v257 = vsel %vm253, %v250, %v244
    %v258 = vlaneseq
    %v259 = vshrl.u32 %v258, 7
    %v260 = vsub.s32 0, %v259
    %v261 = vrot.slane %v52, %v260
    %v262 = vlaneseq
    %v263 = vshrl.u32 %v262, 7
    %v264 = vsub.s32 0, %v263
    %v265 = vrot.slane %v53, %v264
    %v266 = vlaneseq
    %v267 = vshrl.u32 %v266, 7
    %v268 = vsub.s32 0, %v267
    %v269 = vrot.slane %v54, %v268
    %v270 = vlaneseq
    %v271 = vshrl.u32 %v270, 7
    %v272 = vsub.s32 0, %v271
    %v273 = vrot.slane %v55, %v272
    %v274 = vmul.f32 %v257, %v261
    %v275 = vmul.f32 %v256, %v265
    %v276 = vmul.f32 %v255, %v269
    %v277 = vmul.f32 %v254, %v273
    %278 = vrot.lane.b32.xlu0 %v148, 16
    %v279 = vpop.permute.xlu0 %278
    %280 = vrot.lane.b32.xlu0 %v236, 16
    %v281 = vpop.permute.xlu0 %280
    %282 = vrot.lane.b32.xlu0 %v234, 16
    %v283 = vpop.permute.xlu0 %282
    %284 = vrot.lane.b32.xlu0 %v239, 16
    %v285 = vpop.permute.xlu0 %284
    %vm286 = vcmp.lt.s32.totalorder %v252, 16
    %v287 = vsel %vm286, %v283, %v285
    %v288 = vsel %vm286, %v281, %v283
    %v289 = vsel %vm286, %v279, %v281
    %v290 = vsel %vm286, %v285, %v279
    %v291 = vlaneseq
    %v292 = vshrl.u32 %v291, 7
    %v293 = vsub.s32 1, %v292
    %v294 = vrot.slane %v52, %v293
    %v295 = vlaneseq
    %v296 = vshrl.u32 %v295, 7
    %v297 = vsub.s32 1, %v296
    %v298 = vrot.slane %v53, %v297
    %v299 = vlaneseq
    %v300 = vshrl.u32 %v299, 7
    %v301 = vsub.s32 1, %v300
    %v302 = vrot.slane %v54, %v301
    %v303 = vlaneseq
    %v304 = vshrl.u32 %v303, 7
    %v305 = vsub.s32 1, %v304
    %v306 = vrot.slane %v55, %v305
    %v307 = vmul.f32 %v290, %v294
    %v308 = vmul.f32 %v289, %v298
    %v309 = vmul.f32 %v288, %v302
    %v310 = vmul.f32 %v287, %v306
    %311 = vrot.lane.b32.xlu0 %v148, 15
    %v312 = vpop.permute.xlu0 %311
    %313 = vrot.lane.b32.xlu0 %v236, 15
    %v314 = vpop.permute.xlu0 %313
    %315 = vrot.lane.b32.xlu0 %v234, 15
    %v316 = vpop.permute.xlu0 %315
    %317 = vrot.lane.b32.xlu0 %v239, 15
    %v318 = vpop.permute.xlu0 %317
    %vm319 = vcmp.lt.s32.totalorder %v252, 15
    %v320 = vsel %vm319, %v316, %v318
    %v321 = vsel %vm319, %v314, %v316
    %v322 = vsel %vm319, %v312, %v314
    %v323 = vsel %vm319, %v318, %v312
    %v324 = vlaneseq
    %v325 = vshrl.u32 %v324, 7
    %v326 = vsub.s32 2, %v325
    %v327 = vrot.slane %v52, %v326
    %v328 = vlaneseq
    %v329 = vshrl.u32 %v328, 7
    %v330 = vsub.s32 2, %v329
    %v331 = vrot.slane %v53, %v330
    %v332 = vlaneseq
    %v333 = vshrl.u32 %v332, 7
    %v334 = vsub.s32 2, %v333
    %v335 = vrot.slane %v54, %v334
    %v336 = vlaneseq
    %v337 = vshrl.u32 %v336, 7
    %v338 = vsub.s32 2, %v337
    %v339 = vrot.slane %v55, %v338
    %v340 = vmul.f32 %v323, %v327
    %v341 = vmul.f32 %v322, %v331
    %v342 = vmul.f32 %v321, %v335
    %v343 = vmul.f32 %v320, %v339
    %344 = vrot.lane.b32.xlu0 %v148, 1
    %v345 = vpop.permute.xlu0 %344
    %346 = vrot.lane.b32.xlu0 %v236, 1
    %v347 = vpop.permute.xlu0 %346
    %348 = vrot.lane.b32.xlu0 %v234, 1
    %v349 = vpop.permute.xlu0 %348
    %350 = vrot.lane.b32.xlu0 %v239, 1
    %v351 = vpop.permute.xlu0 %350
    %vm352 = vcmp.lt.s32.totalorder %v252, 1
    %v353 = vsel %vm352, %v349, %v351
    %v354 = vsel %vm352, %v347, %v349
    %v355 = vsel %vm352, %v345, %v347
    %v356 = vsel %vm352, %v351, %v345
    %v357 = vlaneseq
    %v358 = vshrl.u32 %v357, 7
    %v359 = vsub.s32 3, %v358
    %v360 = vrot.slane %v52, %v359
    %v361 = vlaneseq
    %v362 = vshrl.u32 %v361, 7
    %v363 = vsub.s32 3, %v362
    %v364 = vrot.slane %v53, %v363
    %v365 = vlaneseq
    %v366 = vshrl.u32 %v365, 7
    %v367 = vsub.s32 3, %v366
    %v368 = vrot.slane %v54, %v367
    %v369 = vlaneseq
    %v370 = vshrl.u32 %v369, 7
    %v371 = vsub.s32 3, %v370
    %v372 = vrot.slane %v55, %v371
    %v373 = vmul.f32 %v356, %v360
    %v374 = vmul.f32 %v355, %v364
    %v375 = vmul.f32 %v354, %v368
    %v376 = vmul.f32 %v353, %v372
    %377 = vrot.lane.b32.xlu0 %v148, 127
    %v378 = vpop.permute.xlu0 %377
    %379 = vrot.lane.b32.xlu0 %v236, 127
    %v380 = vpop.permute.xlu0 %379
    %381 = vrot.lane.b32.xlu0 %v234, 127
    %v382 = vpop.permute.xlu0 %381
    %383 = vrot.lane.b32.xlu0 %v239, 127
    %v384 = vpop.permute.xlu0 %383
    %vm385 = vcmp.lt.s32.totalorder %v252, 127
    %v386 = vsel %vm385, %v382, %v384
    %v387 = vsel %vm385, %v380, %v382
    %v388 = vsel %vm385, %v378, %v380
    %v389 = vsel %vm385, %v384, %v378
    %v390 = vlaneseq
    %v391 = vshrl.u32 %v390, 7
    %v392 = vsub.s32 5, %v391
    %v393 = vrot.slane %v52, %v392
    %v394 = vlaneseq
    %v395 = vshrl.u32 %v394, 7
    %v396 = vsub.s32 5, %v395
    %v397 = vrot.slane %v53, %v396
    %v398 = vlaneseq
    %v399 = vshrl.u32 %v398, 7
    %v400 = vsub.s32 5, %v399
    %v401 = vrot.slane %v54, %v400
    %v402 = vlaneseq
    %v403 = vshrl.u32 %v402, 7
    %v404 = vsub.s32 5, %v403
    %v405 = vrot.slane %v55, %v404
    %v406 = vmul.f32 %v388, %v393
    %v407 = vmul.f32 %v387, %v397
    %v408 = vmul.f32 %v386, %v401
    %v409 = vmul.f32 %v389, %v405
    %410 = vrot.lane.b32.xlu0 %v148, 113
    %v411 = vpop.permute.xlu0 %410
    %412 = vrot.lane.b32.xlu0 %v236, 113
    %v413 = vpop.permute.xlu0 %412
    %414 = vrot.lane.b32.xlu0 %v234, 113
    %v415 = vpop.permute.xlu0 %414
    %416 = vrot.lane.b32.xlu0 %v239, 113
    %v417 = vpop.permute.xlu0 %416
    %vm418 = vcmp.lt.s32.totalorder %v252, 113
    %v419 = vsel %vm418, %v415, %v417
    %v420 = vsel %vm418, %v413, %v415
    %v421 = vsel %vm418, %v411, %v413
    %v422 = vsel %vm418, %v417, %v411
    %v423 = vlaneseq
    %v424 = vshrl.u32 %v423, 7
    %v425 = vsub.s32 6, %v424
    %v426 = vrot.slane %v52, %v425
    %v427 = vlaneseq
    %v428 = vshrl.u32 %v427, 7
    %v429 = vsub.s32 6, %v428
    %v430 = vrot.slane %v53, %v429
    %v431 = vlaneseq
    %v432 = vshrl.u32 %v431, 7
    %v433 = vsub.s32 6, %v432
    %v434 = vrot.slane %v54, %v433
    %v435 = vlaneseq
    %v436 = vshrl.u32 %v435, 7
    %v437 = vsub.s32 6, %v436
    %v438 = vrot.slane %v55, %v437
    %v439 = vmul.f32 %v421, %v426
    %v440 = vmul.f32 %v420, %v430
    %v441 = vmul.f32 %v419, %v434
    %v442 = vmul.f32 %v422, %v438
    %443 = vrot.lane.b32.xlu0 %v148, 112
    %v444 = vpop.permute.xlu0 %443
    %445 = vrot.lane.b32.xlu0 %v236, 112
    %v446 = vpop.permute.xlu0 %445
    %447 = vrot.lane.b32.xlu0 %v234, 112
    %v448 = vpop.permute.xlu0 %447
    %449 = vrot.lane.b32.xlu0 %v239, 112
    %v450 = vpop.permute.xlu0 %449
    %vm451 = vcmp.lt.s32.totalorder %v252, 112
    %v452 = vsel %vm451, %v448, %v450
    %v453 = vsel %vm451, %v446, %v448
    %v454 = vsel %vm451, %v444, %v446
    %v455 = vsel %vm451, %v450, %v444
    %v456 = vlaneseq
    %v457 = vshrl.u32 %v456, 7
    %v458 = vsub.s32 7, %v457
    %v459 = vrot.slane %v52, %v458
    %v460 = vlaneseq
    %v461 = vshrl.u32 %v460, 7
    %v462 = vsub.s32 7, %v461
    %v463 = vrot.slane %v53, %v462
    %v464 = vlaneseq
    %v465 = vshrl.u32 %v464, 7
    %v466 = vsub.s32 7, %v465
    %v467 = vrot.slane %v54, %v466
    %v468 = vlaneseq
    %v469 = vshrl.u32 %v468, 7
    %v470 = vsub.s32 7, %v469
    %v471 = vrot.slane %v55, %v470
    %v472 = vmul.f32 %v454, %v459
    %v473 = vmul.f32 %v453, %v463
    %v474 = vmul.f32 %v452, %v467
    %v475 = vmul.f32 %v455, %v471
    %476 = vrot.lane.b32.xlu0 %v148, 111
    %v477 = vpop.permute.xlu0 %476
    %478 = vrot.lane.b32.xlu0 %v236, 111
    %v479 = vpop.permute.xlu0 %478
    %480 = vrot.lane.b32.xlu0 %v234, 111
    %v481 = vpop.permute.xlu0 %480
    %482 = vrot.lane.b32.xlu0 %v239, 111
    %v483 = vpop.permute.xlu0 %482
    %vm484 = vcmp.lt.s32.totalorder %v252, 111
    %v485 = vsel %vm484, %v481, %v483
    %v486 = vsel %vm484, %v479, %v481
    %v487 = vsel %vm484, %v477, %v479
    %v488 = vsel %vm484, %v483, %v477
    %v489 = vlaneseq
    %v490 = vshrl.u32 %v489, 7
    %v491 = vsub.s32 0, %v490
    %v492 = vrot.slane %v56, %v491
    %v493 = vlaneseq
    %v494 = vshrl.u32 %v493, 7
    %v495 = vsub.s32 0, %v494
    %v496 = vrot.slane %v57, %v495
    %v497 = vlaneseq
    %v498 = vshrl.u32 %v497, 7
    %v499 = vsub.s32 0, %v498
    %v500 = vrot.slane %v58, %v499
    %v501 = vlaneseq
    %v502 = vshrl.u32 %v501, 7
    %v503 = vsub.s32 0, %v502
    %v504 = vrot.slane %v59, %v503
    %v505 = vmul.f32 %v487, %v492
    %v506 = vmul.f32 %v486, %v496
    %v507 = vmul.f32 %v485, %v500
    %v508 = vmul.f32 %v488, %v504
    %v513 = vrot.slane %v307, 4
    %v514 = vrot.slane %v308, 4
    %v515 = vrot.slane %v309, 4
    %v516 = vrot.slane %v310, 4
    %v525 = vrot.slane %v373, 4
    %v526 = vrot.slane %v374, 4
    %v527 = vrot.slane %v375, 4
    %v528 = vrot.slane %v376, 4
    %v537 = vrot.slane %v406, 4
    %v538 = vrot.slane %v407, 4
    %v539 = vrot.slane %v408, 4
    %v540 = vrot.slane %v409, 4
    %v549 = vrot.slane %v472, 4
    %v550 = vrot.slane %v473, 4
    %v551 = vrot.slane %v474, 4
    %v552 = vrot.slane %v475, 4
    %v557 = vsel %vm65, %v274, %v513
    %v558 = vsel %vm65, %v275, %v514
    %v559 = vsel %vm65, %v276, %v515
    %v560 = vsel %vm65, %v277, %v516
    %v561 = vsel %vm65, %v340, %v525
    %v562 = vsel %vm65, %v341, %v526
    %v563 = vsel %vm65, %v342, %v527
    %v564 = vsel %vm65, %v343, %v528
    %v565 = vsel %vm65, %v148, %v537
    %v566 = vsel %vm65, %v236, %v538
    %v567 = vsel %vm65, %v234, %v539
    %v568 = vsel %vm65, %v239, %v540
    %v569 = vsel %vm65, %v439, %v549
    %v570 = vsel %vm65, %v440, %v550
    %v571 = vsel %vm65, %v441, %v551
    %v572 = vsel %vm65, %v442, %v552
    %574 = vset.pattern.permute.xlu0 0
    %575 = vperm.xlu0 %574, %v242
    %v576 = vpop.permute.xlu0 %575
    %vm578 = vcmask 293888
    %v580 = vsel %vm578, %v241, 0
    %v583 = vsel %vm65, %v505, 0
    %v586 = vsel %vm65, %v506, 0
    %v589 = vsel %vm65, %v507, 0
    %v592 = vsel %vm65, %v508, 0
    %594 = vmatprep.subr.mxu0 %v558
    %595 = vmatpush1.msra.mxu0 %v557
    %596 = vmatprep.subr.mxu0 %v562
    %597 = vmatpush1.msra.mxu0 %v561
    %598 = vmatprep.subr.mxu0 %v566
    %599 = vmatpush1.msra.mxu0 %v565
    %600 = vmatprep.subr.mxu0 %v570
    %601 = vmatpush1.msra.mxu0 %v569
    %602 = vmatprep.subr.mxu0 %v586
    %603 = vmatpush1.msra.mxu0 %v583
    %604 = vmatprep.subr.mxu0 0.0
    %605 = vmatpush1.msra.mxu0 0.0
    %606 = vmatprep.subr.mxu0 0.0
    %607 = vmatpush1.msra.mxu0 0.0
    %608 = vmatprep.subr.mxu0 0.0
    %609 = vmatpush1.msra.mxu0 0.0
    %610 = vmatprep.subr.mxu0 0.0
    %611 = vmatpush1.msra.mxu0 0.0
    %612 = vmatprep.subr.mxu0 0.0
    %613 = vmatpush1.msra.mxu0 0.0
    %614 = vmatprep.subr.mxu0 0.0
    %615 = vmatpush1.msra.mxu0 0.0
    %616 = vmatprep.subr.mxu0 0.0
    %617 = vmatpush1.msra.mxu0 0.0
    %618 = vmatprep.subr.mxu0 0.0
    %619 = vmatpush1.msra.mxu0 0.0
    %620 = vmatprep.subr.mxu0 0.0
    %621 = vmatpush1.msra.mxu0 0.0
    %622 = vmatprep.subr.mxu0 0.0
    %623 = vmatpush1.msra.mxu0 0.0
    %624 = vmatprep.subr.mxu0 0.0
    %625 = vmatpush1.msra.mxu0 0.0
    %626 = vmatprep.subr.mxu0 0.0
    %627 = vmatpush1.msra.mxu0 0.0
    %628 = vmatprep.subr.mxu0 0.0
    %629 = vmatpush1.msra.mxu0 0.0
    %630 = vmatprep.subr.mxu0 0.0
    %631 = vmatpush1.msra.mxu0 0.0
    %632 = vmatprep.subr.mxu0 0.0
    %633 = vmatpush1.msra.mxu0 0.0
    %634 = vmatprep.subr.mxu0 0.0
    %635 = vmatpush1.msra.mxu0 0.0
    %636 = vmatprep.subr.mxu0 0.0
    %637 = vmatpush1.msra.mxu0 0.0
    %638 = vmatprep.subr.mxu0 0.0
    %639 = vmatpush1.msra.mxu0 0.0
    %640 = vmatprep.subr.mxu0 0.0
    %641 = vmatpush1.msra.mxu0 0.0
    %642 = vmatprep.subr.mxu0 0.0
    %643 = vmatpush1.msra.mxu0 0.0
    %644 = vmatprep.subr.mxu0 0.0
    %645 = vmatpush1.msra.mxu0 0.0
    %646 = vmatprep.subr.mxu0 0.0
    %647 = vmatpush1.msra.mxu0 0.0
    %648 = vmatprep.subr.mxu0 0.0
    %649 = vmatpush1.msra.mxu0 0.0
    %650 = vmatprep.subr.mxu0 0.0
    %651 = vmatpush1.msra.mxu0 0.0
    %652 = vmatprep.subr.mxu0 0.0
    %653 = vmatpush1.msra.mxu0 0.0
    %654 = vmatprep.subr.mxu0 0.0
    %655 = vmatpush1.msra.mxu0 0.0
    %656 = vmatprep.subr.mxu0 0.0
    %657 = vmatpush1.msra.mxu0 0.0
    %658 = vmatprep.mubr.f32.mxu0 0.0
    %659 = vmatmul.mubr.f32.gmra.mrb[0].mxu0 %v580
    %v660 = vpop.f32.mrb[0].mxu0
    %v661 = vadd.f32 %v576, %v660
    %v662 = vpop.f32.mrb[0].mxu0
    %v663 = vadd.f32 %v576, %v662
    %664 = vdwg.mxu0
    %665 = vmatprep.subr.mxu0 %v560
    %666 = vmatpush1.msra.mxu0 %v559
    %667 = vmatprep.subr.mxu0 %v564
    %668 = vmatpush1.msra.mxu0 %v563
    %669 = vmatprep.subr.mxu0 %v568
    %670 = vmatpush1.msra.mxu0 %v567
    %671 = vmatprep.subr.mxu0 %v572
    %672 = vmatpush1.msra.mxu0 %v571
    %673 = vmatprep.subr.mxu0 %v592
    %674 = vmatpush1.msra.mxu0 %v589
    %675 = vmatprep.subr.mxu0 0.0
    %676 = vmatpush1.msra.mxu0 0.0
    %677 = vmatprep.subr.mxu0 0.0
    %678 = vmatpush1.msra.mxu0 0.0
    %679 = vmatprep.subr.mxu0 0.0
    %680 = vmatpush1.msra.mxu0 0.0
    %681 = vmatprep.subr.mxu0 0.0
    %682 = vmatpush1.msra.mxu0 0.0
    %683 = vmatprep.subr.mxu0 0.0
    %684 = vmatpush1.msra.mxu0 0.0
    %685 = vmatprep.subr.mxu0 0.0
    %686 = vmatpush1.msra.mxu0 0.0
    %687 = vmatprep.subr.mxu0 0.0
    %688 = vmatpush1.msra.mxu0 0.0
    %689 = vmatprep.subr.mxu0 0.0
    %690 = vmatpush1.msra.mxu0 0.0
    %691 = vmatprep.subr.mxu0 0.0
    %692 = vmatpush1.msra.mxu0 0.0
    %693 = vmatprep.subr.mxu0 0.0
    %694 = vmatpush1.msra.mxu0 0.0
    %695 = vmatprep.subr.mxu0 0.0
    %696 = vmatpush1.msra.mxu0 0.0
    %697 = vmatprep.subr.mxu0 0.0
    %698 = vmatpush1.msra.mxu0 0.0
    %699 = vmatprep.subr.mxu0 0.0
    %700 = vmatpush1.msra.mxu0 0.0
    %701 = vmatprep.subr.mxu0 0.0
    %702 = vmatpush1.msra.mxu0 0.0
    %703 = vmatprep.subr.mxu0 0.0
    %704 = vmatpush1.msra.mxu0 0.0
    %705 = vmatprep.subr.mxu0 0.0
    %706 = vmatpush1.msra.mxu0 0.0
    %707 = vmatprep.subr.mxu0 0.0
    %708 = vmatpush1.msra.mxu0 0.0
    %709 = vmatprep.subr.mxu0 0.0
    %710 = vmatpush1.msra.mxu0 0.0
    %711 = vmatprep.subr.mxu0 0.0
    %712 = vmatpush1.msra.mxu0 0.0
    %713 = vmatprep.subr.mxu0 0.0
    %714 = vmatpush1.msra.mxu0 0.0
    %715 = vmatprep.subr.mxu0 0.0
    %716 = vmatpush1.msra.mxu0 0.0
    %717 = vmatprep.subr.mxu0 0.0
    %718 = vmatpush1.msra.mxu0 0.0
    %719 = vmatprep.subr.mxu0 0.0
    %720 = vmatpush1.msra.mxu0 0.0
    %721 = vmatprep.subr.mxu0 0.0
    %722 = vmatpush1.msra.mxu0 0.0
    %723 = vmatprep.subr.mxu0 0.0
    %724 = vmatpush1.msra.mxu0 0.0
    %725 = vmatprep.subr.mxu0 0.0
    %726 = vmatpush1.msra.mxu0 0.0
    %727 = vmatprep.subr.mxu0 0.0
    %728 = vmatpush1.msra.mxu0 0.0
    %729 = vmatprep.mubr.f32.mxu0 0.0
    %730 = vmatmul.mubr.f32.gmra.mrb[0].mxu0 %v580
    %v731 = vpop.f32.mrb[0].mxu0
    %v732 = vadd.f32 %v576, %v731
    %v733 = vpop.f32.mrb[0].mxu0
    %v734 = vadd.f32 %v576, %v733
    %735 = vdwg.mxu0
    %v736 = vld [vmem:[%s6] sm:$0xf]
    %v737 = vld [vmem:[%s7] sm:$0xf]
    %v738 = vsel %vm65, %v661, 0.0
    %v739 = vsel %vm65, %v663, 0.0
    %v740 = vadd.f32 %v738, %v739
    %741 = vadd.xlane.f32.xlu0 %v740
    %v742 = vpop.xlane.xlu0 %741
    %v743 = vrot.slane %v742, 4
    %v744 = vadd.f32 %v742, %v743
    %v745 = vrot.slane %v744, 2
    %v746 = vadd.f32 %v744, %v745
    %v747 = vrot.slane %v746, 1
    %v748 = vadd.f32 %v746, %v747
    %s749 = vtos %v748
    %v750 = vmul.f32 %v661, %v661
    %v751 = vmul.f32 %v663, %v663
    %v752 = vsel %vm65, %v750, 0.0
    %v753 = vsel %vm65, %v751, 0.0
    %v754 = vadd.f32 %v752, %v753
    %755 = vadd.xlane.f32.xlu0 %v754
    %v756 = vpop.xlane.xlu0 %755
    %v757 = vrot.slane %v756, 4
    %v758 = vadd.f32 %v756, %v757
    %v759 = vrot.slane %v758, 2
    %v760 = vadd.f32 %v758, %v759
    %v761 = vrot.slane %v760, 1
    %v762 = vadd.f32 %v760, %v761
    %s763 = vtos %v762
    %v764 = vrcp.pop 1024.0
    %s765 = vtos %v764
    %s766 = smul.f32 %s749, %s765
    %s767 = smul.f32 %s766, 1024.0
    %s768 = smul.f32 %s767, %s766
    %s769 = ssub.f32 %s763, %s768
    %s770 = smax.f32 %s769, 0.0
    %v771 = vrcp.pop 1023.0
    %s772 = vtos %v771
    %s773 = smul.f32 %s770, %s772
    %v774 = vstv %s773
    %v775 = vrsqrt.pop %v774
    %v776 = vmul.f32 %v774, %v775
    %vm777 = vcmp.eq.f32.partialorder %v774, inf
    %v778 = vsel %vm777, %v774, %v776
    %vm779 = vcmp.eq.f32.partialorder %v774, 0.0
    %v780 = vand.u32 %v774, 2147483648
    %v781 = vsel %vm779, %v780, %v778
    %s782 = vtos %v781
    %s783 = sadd.f32 %s782, 1e-10
    %v784 = vstv %s783
    %v785 = vrcp.pop %v784
    %s786 = vtos %v785
    %v787 = vstv %s786
    %v788 = vmul.f32 %v787, %v736
    %v789 = vstv %s766
    %v790 = vmul.f32 %v789, %v788
    %v791 = vsub.f32 %v737, %v790
    %793 = vset.pattern.permute.xlu0 0
    %794 = vperm.xlu0 %793, %v788
    %v795 = vpop.permute.xlu0 %794
    %v797 = vmul.f32 %v661, %v795
    %v798 = vmul.f32 %v663, %v795
    %800 = vset.pattern.permute.xlu0 0
    %801 = vperm.xlu0 %800, %v791
    %v802 = vpop.permute.xlu0 %801
    %v804 = vadd.f32 %v797, %v802
    %v805 = vadd.f32 %v798, %v802
    %v806 = vmax.f32 %v804, 0.0
    %v807 = vmax.f32 %v805, 0.0
    %v808 = vsel %vm65, %v732, 0.0
    %v809 = vsel %vm65, %v734, 0.0
    %v810 = vadd.f32 %v808, %v809
    %811 = vadd.xlane.f32.xlu0 %v810
    %v812 = vpop.xlane.xlu0 %811
    %v813 = vrot.slane %v812, 4
    %v814 = vadd.f32 %v812, %v813
    %v815 = vrot.slane %v814, 2
    %v816 = vadd.f32 %v814, %v815
    %v817 = vrot.slane %v816, 1
    %v818 = vadd.f32 %v816, %v817
    %s819 = vtos %v818
    %v820 = vmul.f32 %v732, %v732
    %v821 = vmul.f32 %v734, %v734
    %v822 = vsel %vm65, %v820, 0.0
    %v823 = vsel %vm65, %v821, 0.0
    %v824 = vadd.f32 %v822, %v823
    %825 = vadd.xlane.f32.xlu0 %v824
    %v826 = vpop.xlane.xlu0 %825
    %v827 = vrot.slane %v826, 4
    %v828 = vadd.f32 %v826, %v827
    %v829 = vrot.slane %v828, 2
    %v830 = vadd.f32 %v828, %v829
    %v831 = vrot.slane %v830, 1
    %v832 = vadd.f32 %v830, %v831
    %s833 = vtos %v832
    %v834 = vrcp.pop 1024.0
    %s835 = vtos %v834
    %s836 = smul.f32 %s819, %s835
    %s837 = smul.f32 %s836, 1024.0
    %s838 = smul.f32 %s837, %s836
    %s839 = ssub.f32 %s833, %s838
    %s840 = smax.f32 %s839, 0.0
    %v841 = vrcp.pop 1023.0
    %s842 = vtos %v841
    %s843 = smul.f32 %s840, %s842
    %v844 = vstv %s843
    %v845 = vrsqrt.pop %v844
    %v846 = vmul.f32 %v844, %v845
    %vm847 = vcmp.eq.f32.partialorder %v844, inf
    %v848 = vsel %vm847, %v844, %v846
    %vm849 = vcmp.eq.f32.partialorder %v844, 0.0
    %v850 = vand.u32 %v844, 2147483648
    %v851 = vsel %vm849, %v850, %v848
    %s852 = vtos %v851
    %s853 = sadd.f32 %s852, 1e-10
    %v854 = vstv %s853
    %v855 = vrcp.pop %v854
    %s856 = vtos %v855
    %v857 = vstv %s856
    %v858 = vmul.f32 %v857, %v736
    %v859 = vstv %s836
    %v860 = vmul.f32 %v859, %v858
    %v861 = vsub.f32 %v737, %v860
    %863 = vset.pattern.permute.xlu0 0
    %864 = vperm.xlu0 %863, %v858
    %v865 = vpop.permute.xlu0 %864
    %v867 = vmul.f32 %v732, %v865
    %v868 = vmul.f32 %v734, %v865
    %870 = vset.pattern.permute.xlu0 0
    %871 = vperm.xlu0 %870, %v861
    %v872 = vpop.permute.xlu0 %871
    %v874 = vadd.f32 %v867, %v872
    %v875 = vadd.f32 %v868, %v872
    %v876 = vmax.f32 %v874, 0.0
    %v877 = vmax.f32 %v875, 0.0
    %v878 = vld [vmem:[%s8] sm:$0xf]
    %v879 = vld [vmem:[%s9] sm:$0xf]
    %880 = vrot.lane.b32.xlu0 %v806, 17
    %v881 = vpop.permute.xlu0 %880
    %882 = vrot.lane.b32.xlu0 %v807, 17
    %v883 = vpop.permute.xlu0 %882
    %884 = vrot.lane.b32.xlu0 %v876, 17
    %v885 = vpop.permute.xlu0 %884
    %886 = vrot.lane.b32.xlu0 %v877, 17
    %v887 = vpop.permute.xlu0 %886
    %v888 = vsel %vm253, %v885, %v887
    %v889 = vsel %vm253, %v883, %v885
    %v890 = vsel %vm253, %v881, %v883
    %v891 = vsel %vm253, %v887, %v881
    %v892 = vmul.f32 %v891, %v261
    %v893 = vmul.f32 %v890, %v265
    %v894 = vmul.f32 %v889, %v269
    %v895 = vmul.f32 %v888, %v273
    %896 = vrot.lane.b32.xlu0 %v806, 16
    %v897 = vpop.permute.xlu0 %896
    %898 = vrot.lane.b32.xlu0 %v807, 16
    %v899 = vpop.permute.xlu0 %898
    %900 = vrot.lane.b32.xlu0 %v876, 16
    %v901 = vpop.permute.xlu0 %900
    %902 = vrot.lane.b32.xlu0 %v877, 16
    %v903 = vpop.permute.xlu0 %902
    %v904 = vsel %vm286, %v901, %v903
    %v905 = vsel %vm286, %v899, %v901
    %v906 = vsel %vm286, %v897, %v899
    %v907 = vsel %vm286, %v903, %v897
    %v908 = vmul.f32 %v907, %v294
    %v909 = vmul.f32 %v906, %v298
    %v910 = vmul.f32 %v905, %v302
    %v911 = vmul.f32 %v904, %v306
    %912 = vrot.lane.b32.xlu0 %v806, 15
    %v913 = vpop.permute.xlu0 %912
    %914 = vrot.lane.b32.xlu0 %v807, 15
    %v915 = vpop.permute.xlu0 %914
    %916 = vrot.lane.b32.xlu0 %v876, 15
    %v917 = vpop.permute.xlu0 %916
    %918 = vrot.lane.b32.xlu0 %v877, 15
    %v919 = vpop.permute.xlu0 %918
    %v920 = vsel %vm319, %v917, %v919
    %v921 = vsel %vm319, %v915, %v917
    %v922 = vsel %vm319, %v913, %v915
    %v923 = vsel %vm319, %v919, %v913
    %v924 = vmul.f32 %v923, %v327
    %v925 = vmul.f32 %v922, %v331
    %v926 = vmul.f32 %v921, %v335
    %v927 = vmul.f32 %v920, %v339
    %928 = vrot.lane.b32.xlu0 %v806, 1
    %v929 = vpop.permute.xlu0 %928
    %930 = vrot.lane.b32.xlu0 %v807, 1
    %v931 = vpop.permute.xlu0 %930
    %932 = vrot.lane.b32.xlu0 %v876, 1
    %v933 = vpop.permute.xlu0 %932
    %934 = vrot.lane.b32.xlu0 %v877, 1
    %v935 = vpop.permute.xlu0 %934
    %v936 = vsel %vm352, %v933, %v935
    %v937 = vsel %vm352, %v931, %v933
    %v938 = vsel %vm352, %v929, %v931
    %v939 = vsel %vm352, %v935, %v929
    %v940 = vmul.f32 %v939, %v360
    %v941 = vmul.f32 %v938, %v364
    %v942 = vmul.f32 %v937, %v368
    %v943 = vmul.f32 %v936, %v372
    %944 = vrot.lane.b32.xlu0 %v806, 127
    %v945 = vpop.permute.xlu0 %944
    %946 = vrot.lane.b32.xlu0 %v807, 127
    %v947 = vpop.permute.xlu0 %946
    %948 = vrot.lane.b32.xlu0 %v876, 127
    %v949 = vpop.permute.xlu0 %948
    %950 = vrot.lane.b32.xlu0 %v877, 127
    %v951 = vpop.permute.xlu0 %950
    %v952 = vsel %vm385, %v949, %v951
    %v953 = vsel %vm385, %v947, %v949
    %v954 = vsel %vm385, %v945, %v947
    %v955 = vsel %vm385, %v951, %v945
    %v956 = vmul.f32 %v954, %v393
    %v957 = vmul.f32 %v953, %v397
    %v958 = vmul.f32 %v952, %v401
    %v959 = vmul.f32 %v955, %v405
    %960 = vrot.lane.b32.xlu0 %v806, 113
    %v961 = vpop.permute.xlu0 %960
    %962 = vrot.lane.b32.xlu0 %v807, 113
    %v963 = vpop.permute.xlu0 %962
    %964 = vrot.lane.b32.xlu0 %v876, 113
    %v965 = vpop.permute.xlu0 %964
    %966 = vrot.lane.b32.xlu0 %v877, 113
    %v967 = vpop.permute.xlu0 %966
    %v968 = vsel %vm418, %v965, %v967
    %v969 = vsel %vm418, %v963, %v965
    %v970 = vsel %vm418, %v961, %v963
    %v971 = vsel %vm418, %v967, %v961
    %v972 = vmul.f32 %v970, %v426
    %v973 = vmul.f32 %v969, %v430
    %v974 = vmul.f32 %v968, %v434
    %v975 = vmul.f32 %v971, %v438
    %976 = vrot.lane.b32.xlu0 %v806, 112
    %v977 = vpop.permute.xlu0 %976
    %978 = vrot.lane.b32.xlu0 %v807, 112
    %v979 = vpop.permute.xlu0 %978
    %980 = vrot.lane.b32.xlu0 %v876, 112
    %v981 = vpop.permute.xlu0 %980
    %982 = vrot.lane.b32.xlu0 %v877, 112
    %v983 = vpop.permute.xlu0 %982
    %v984 = vsel %vm451, %v981, %v983
    %v985 = vsel %vm451, %v979, %v981
    %v986 = vsel %vm451, %v977, %v979
    %v987 = vsel %vm451, %v983, %v977
    %v988 = vmul.f32 %v986, %v459
    %v989 = vmul.f32 %v985, %v463
    %v990 = vmul.f32 %v984, %v467
    %v991 = vmul.f32 %v987, %v471
    %992 = vrot.lane.b32.xlu0 %v806, 111
    %v993 = vpop.permute.xlu0 %992
    %994 = vrot.lane.b32.xlu0 %v807, 111
    %v995 = vpop.permute.xlu0 %994
    %996 = vrot.lane.b32.xlu0 %v876, 111
    %v997 = vpop.permute.xlu0 %996
    %998 = vrot.lane.b32.xlu0 %v877, 111
    %v999 = vpop.permute.xlu0 %998
    %v1000 = vsel %vm484, %v997, %v999
    %v1001 = vsel %vm484, %v995, %v997
    %v1002 = vsel %vm484, %v993, %v995
    %v1003 = vsel %vm484, %v999, %v993
    %v1004 = vmul.f32 %v1002, %v492
    %v1005 = vmul.f32 %v1001, %v496
    %v1006 = vmul.f32 %v1000, %v500
    %v1007 = vmul.f32 %v1003, %v504
    %v1012 = vrot.slane %v908, 4
    %v1013 = vrot.slane %v909, 4
    %v1014 = vrot.slane %v910, 4
    %v1015 = vrot.slane %v911, 4
    %v1024 = vrot.slane %v940, 4
    %v1025 = vrot.slane %v941, 4
    %v1026 = vrot.slane %v942, 4
    %v1027 = vrot.slane %v943, 4
    %v1036 = vrot.slane %v956, 4
    %v1037 = vrot.slane %v957, 4
    %v1038 = vrot.slane %v958, 4
    %v1039 = vrot.slane %v959, 4
    %v1048 = vrot.slane %v988, 4
    %v1049 = vrot.slane %v989, 4
    %v1050 = vrot.slane %v990, 4
    %v1051 = vrot.slane %v991, 4
    %v1056 = vsel %vm65, %v892, %v1012
    %v1057 = vsel %vm65, %v893, %v1013
    %v1058 = vsel %vm65, %v894, %v1014
    %v1059 = vsel %vm65, %v895, %v1015
    %v1060 = vsel %vm65, %v924, %v1024
    %v1061 = vsel %vm65, %v925, %v1025
    %v1062 = vsel %vm65, %v926, %v1026
    %v1063 = vsel %vm65, %v927, %v1027
    %v1064 = vsel %vm65, %v806, %v1036
    %v1065 = vsel %vm65, %v807, %v1037
    %v1066 = vsel %vm65, %v876, %v1038
    %v1067 = vsel %vm65, %v877, %v1039
    %v1068 = vsel %vm65, %v972, %v1048
    %v1069 = vsel %vm65, %v973, %v1049
    %v1070 = vsel %vm65, %v974, %v1050
    %v1071 = vsel %vm65, %v975, %v1051
    %1073 = vset.pattern.permute.xlu0 0
    %1074 = vperm.xlu0 %1073, %v879
    %v1075 = vpop.permute.xlu0 %1074
    %v1078 = vsel %vm578, %v878, 0
    %v1081 = vsel %vm65, %v1004, 0
    %v1084 = vsel %vm65, %v1005, 0
    %v1087 = vsel %vm65, %v1006, 0
    %v1090 = vsel %vm65, %v1007, 0
    %1092 = vmatprep.subr.mxu0 %v1057
    %1093 = vmatpush1.msra.mxu0 %v1056
    %1094 = vmatprep.subr.mxu0 %v1061
    %1095 = vmatpush1.msra.mxu0 %v1060
    %1096 = vmatprep.subr.mxu0 %v1065
    %1097 = vmatpush1.msra.mxu0 %v1064
    %1098 = vmatprep.subr.mxu0 %v1069
    %1099 = vmatpush1.msra.mxu0 %v1068
    %1100 = vmatprep.subr.mxu0 %v1084
    %1101 = vmatpush1.msra.mxu0 %v1081
    %1102 = vmatprep.subr.mxu0 0.0
    %1103 = vmatpush1.msra.mxu0 0.0
    %1104 = vmatprep.subr.mxu0 0.0
    %1105 = vmatpush1.msra.mxu0 0.0
    %1106 = vmatprep.subr.mxu0 0.0
    %1107 = vmatpush1.msra.mxu0 0.0
    %1108 = vmatprep.subr.mxu0 0.0
    %1109 = vmatpush1.msra.mxu0 0.0
    %1110 = vmatprep.subr.mxu0 0.0
    %1111 = vmatpush1.msra.mxu0 0.0
    %1112 = vmatprep.subr.mxu0 0.0
    %1113 = vmatpush1.msra.mxu0 0.0
    %1114 = vmatprep.subr.mxu0 0.0
    %1115 = vmatpush1.msra.mxu0 0.0
    %1116 = vmatprep.subr.mxu0 0.0
    %1117 = vmatpush1.msra.mxu0 0.0
    %1118 = vmatprep.subr.mxu0 0.0
    %1119 = vmatpush1.msra.mxu0 0.0
    %1120 = vmatprep.subr.mxu0 0.0
    %1121 = vmatpush1.msra.mxu0 0.0
    %1122 = vmatprep.subr.mxu0 0.0
    %1123 = vmatpush1.msra.mxu0 0.0
    %1124 = vmatprep.subr.mxu0 0.0
    %1125 = vmatpush1.msra.mxu0 0.0
    %1126 = vmatprep.subr.mxu0 0.0
    %1127 = vmatpush1.msra.mxu0 0.0
    %1128 = vmatprep.subr.mxu0 0.0
    %1129 = vmatpush1.msra.mxu0 0.0
    %1130 = vmatprep.subr.mxu0 0.0
    %1131 = vmatpush1.msra.mxu0 0.0
    %1132 = vmatprep.subr.mxu0 0.0
    %1133 = vmatpush1.msra.mxu0 0.0
    %1134 = vmatprep.subr.mxu0 0.0
    %1135 = vmatpush1.msra.mxu0 0.0
    %1136 = vmatprep.subr.mxu0 0.0
    %1137 = vmatpush1.msra.mxu0 0.0
    %1138 = vmatprep.subr.mxu0 0.0
    %1139 = vmatpush1.msra.mxu0 0.0
    %1140 = vmatprep.subr.mxu0 0.0
    %1141 = vmatpush1.msra.mxu0 0.0
    %1142 = vmatprep.subr.mxu0 0.0
    %1143 = vmatpush1.msra.mxu0 0.0
    %1144 = vmatprep.subr.mxu0 0.0
    %1145 = vmatpush1.msra.mxu0 0.0
    %1146 = vmatprep.subr.mxu0 0.0
    %1147 = vmatpush1.msra.mxu0 0.0
    %1148 = vmatprep.subr.mxu0 0.0
    %1149 = vmatpush1.msra.mxu0 0.0
    %1150 = vmatprep.subr.mxu0 0.0
    %1151 = vmatpush1.msra.mxu0 0.0
    %1152 = vmatprep.subr.mxu0 0.0
    %1153 = vmatpush1.msra.mxu0 0.0
    %1154 = vmatprep.subr.mxu0 0.0
    %1155 = vmatpush1.msra.mxu0 0.0
    %1156 = vmatprep.mubr.f32.mxu0 0.0
    %1157 = vmatmul.mubr.f32.gmra.mrb[0].mxu0 %v1078
    %v1158 = vpop.f32.mrb[0].mxu0
    %v1159 = vadd.f32 %v1075, %v1158
    %v1160 = vpop.f32.mrb[0].mxu0
    %v1161 = vadd.f32 %v1075, %v1160
    %1162 = vdwg.mxu0
    %1163 = vmatprep.subr.mxu0 %v1059
    %1164 = vmatpush1.msra.mxu0 %v1058
    %1165 = vmatprep.subr.mxu0 %v1063
    %1166 = vmatpush1.msra.mxu0 %v1062
    %1167 = vmatprep.subr.mxu0 %v1067
    %1168 = vmatpush1.msra.mxu0 %v1066
    %1169 = vmatprep.subr.mxu0 %v1071
    %1170 = vmatpush1.msra.mxu0 %v1070
    %1171 = vmatprep.subr.mxu0 %v1090
    %1172 = vmatpush1.msra.mxu0 %v1087
    %1173 = vmatprep.subr.mxu0 0.0
    %1174 = vmatpush1.msra.mxu0 0.0
    %1175 = vmatprep.subr.mxu0 0.0
    %1176 = vmatpush1.msra.mxu0 0.0
    %1177 = vmatprep.subr.mxu0 0.0
    %1178 = vmatpush1.msra.mxu0 0.0
    %1179 = vmatprep.subr.mxu0 0.0
    %1180 = vmatpush1.msra.mxu0 0.0
    %1181 = vmatprep.subr.mxu0 0.0
    %1182 = vmatpush1.msra.mxu0 0.0
    %1183 = vmatprep.subr.mxu0 0.0
    %1184 = vmatpush1.msra.mxu0 0.0
    %1185 = vmatprep.subr.mxu0 0.0
    %1186 = vmatpush1.msra.mxu0 0.0
    %1187 = vmatprep.subr.mxu0 0.0
    %1188 = vmatpush1.msra.mxu0 0.0
    %1189 = vmatprep.subr.mxu0 0.0
    %1190 = vmatpush1.msra.mxu0 0.0
    %1191 = vmatprep.subr.mxu0 0.0
    %1192 = vmatpush1.msra.mxu0 0.0
    %1193 = vmatprep.subr.mxu0 0.0
    %1194 = vmatpush1.msra.mxu0 0.0
    %1195 = vmatprep.subr.mxu0 0.0
    %1196 = vmatpush1.msra.mxu0 0.0
    %1197 = vmatprep.subr.mxu0 0.0
    %1198 = vmatpush1.msra.mxu0 0.0
    %1199 = vmatprep.subr.mxu0 0.0
    %1200 = vmatpush1.msra.mxu0 0.0
    %1201 = vmatprep.subr.mxu0 0.0
    %1202 = vmatpush1.msra.mxu0 0.0
    %1203 = vmatprep.subr.mxu0 0.0
    %1204 = vmatpush1.msra.mxu0 0.0
    %1205 = vmatprep.subr.mxu0 0.0
    %1206 = vmatpush1.msra.mxu0 0.0
    %1207 = vmatprep.subr.mxu0 0.0
    %1208 = vmatpush1.msra.mxu0 0.0
    %1209 = vmatprep.subr.mxu0 0.0
    %1210 = vmatpush1.msra.mxu0 0.0
    %1211 = vmatprep.subr.mxu0 0.0
    %1212 = vmatpush1.msra.mxu0 0.0
    %1213 = vmatprep.subr.mxu0 0.0
    %1214 = vmatpush1.msra.mxu0 0.0
    %1215 = vmatprep.subr.mxu0 0.0
    %1216 = vmatpush1.msra.mxu0 0.0
    %1217 = vmatprep.subr.mxu0 0.0
    %1218 = vmatpush1.msra.mxu0 0.0
    %1219 = vmatprep.subr.mxu0 0.0
    %1220 = vmatpush1.msra.mxu0 0.0
    %1221 = vmatprep.subr.mxu0 0.0
    %1222 = vmatpush1.msra.mxu0 0.0
    %1223 = vmatprep.subr.mxu0 0.0
    %1224 = vmatpush1.msra.mxu0 0.0
    %1225 = vmatprep.subr.mxu0 0.0
    %1226 = vmatpush1.msra.mxu0 0.0
    %1227 = vmatprep.mubr.f32.mxu0 0.0
    %1228 = vmatmul.mubr.f32.gmra.mrb[0].mxu0 %v1078
    %v1229 = vpop.f32.mrb[0].mxu0
    %v1230 = vadd.f32 %v1075, %v1229
    %v1231 = vpop.f32.mrb[0].mxu0
    %v1232 = vadd.f32 %v1075, %v1231
    %1233 = vdwg.mxu0
    %v1234 = vadd.f32 %v1159, %v50
    %v1235 = vadd.f32 %v1161, %v63
    %v1236 = vadd.f32 %v1230, %v51
    %v1237 = vadd.f32 %v1232, %v150
    %v1242 = vcombine.low %v1234, %v1235
    %v1243 = vcombine.low %v1236, %v1237
    %1246 = vst [vmem:[#allocation5] sm:$0xff] %v1242
    %1247 = vst [vmem:[#allocation5 + $0x8] sm:$0xff] %v1243
    // Predicated region
    $region46: #{tpu_custom_call.1} parent=1 // pred_check
      _
    $region47: #{tpu_custom_call.1} parent=1 // pred_check_branch
      %1249 = sbr.rel (0) target = $region49
    $region48: #{tpu_custom_call.1} parent=1 // pred_region
      %s1251 = ssub.s32 256, 256
      %1252 = vsyncadd [#allocation4], %s1251
      %s1254 = sshll.u32 [#allocation5], 4
      %s1255 = int_to_ptr.vmem [resolvable:$true] %s1254
      %1257 = dma.vmem_to_hbm [thread:$0]  %s1255, 256, %s10, [#allocation4]
    $region49: #{tpu_custom_call.1} parent=1 // pred_fallthru
      _
    // Predicated region
    $region50: #{tpu_custom_call.1} parent=1 // pred_check
      _
    $region51: #{tpu_custom_call.1} parent=1 // pred_check_branch
      %1259 = sbr.rel (0) target = $region53
    $region52: #{tpu_custom_call.1} parent=1 // pred_region
      %1260 = dma.done [#allocation4], 256
    $region53: #{tpu_custom_call.1} parent=1 // pred_fallthru
      _
    %1261 = vsyncpa [#allocation3], 1
    %1262 = vsyncpa [#allocation4], 1

</llo_original>
